<compile_context>
chip_gen: v6e
topology: v6e:2x2x1
jax: 0.10.0
libtpu: 0.0.40
codegen_flags: <defaults>
</compile_context>

<pallas_src>
import functools

import jax
import jax.numpy as jnp
from jax import lax
from jax.experimental import pallas as pl
from jax.experimental.pallas import tpu as pltpu

EPS = 1e-5
MATMUL_DTYPE = jnp.bfloat16   # MXU-native operand dtype; accumulation stays f32


def _bn_scale_shift(y_masked, gamma, beta, count, n_ch):
    """Training-mode BatchNorm for channels laid out as (lane % n_ch).

    y_masked : (R, L) f32 with all invalid rows/lanes already zeroed.
    gamma/beta : (1, n_ch) f32.
    Returns per-lane (1, L) scale/shift so that bn(y) = y * scale + shift.
    One-pass sum / sum-of-squares statistics, all in f32.
    """
    _, L = y_masked.shape
    colsum = jnp.sum(y_masked, axis=0, keepdims=True)              # (1, L)
    colsq = jnp.sum(y_masked * y_masked, axis=0, keepdims=True)    # (1, L)
    lane_ch = lax.broadcasted_iota(jnp.int32, (1, L), 1) % n_ch
    inv_count = 1.0 / count
    scale = jnp.zeros((1, L), jnp.float32)
    shift = jnp.zeros((1, L), jnp.float32)
    # n_ch is tiny here (=4); for wide channel counts this unrolled loop should
    # become a one-hot (L, n_ch) matmul reduction + broadcast instead.
    for c in range(n_ch):
        m = lane_ch == c
        s = jnp.sum(jnp.where(m, colsum, 0.0), axis=1, keepdims=True)   # (1,1)
        q = jnp.sum(jnp.where(m, colsq, 0.0), axis=1, keepdims=True)    # (1,1)
        mean = s * inv_count
        var = q * inv_count - mean * mean        # one-pass E[x^2] - E[x]^2, f32
        sc = gamma[0:1, c:c + 1] * lax.rsqrt(var + EPS)
        sh = beta[0:1, c:c + 1] - mean * sc
        scale = scale + jnp.where(m, sc, 0.0)
        shift = shift + jnp.where(m, sh, 0.0)
    return scale, shift


def _basic_block_kernel(x_ref, b1_ref, g1_ref, be1_ref, b2_ref, g2_ref,
                        be2_ref, o_ref, stage_ref, *, N, H, W, C):
    # x_ref    : (N*Hp, Wp*C) f32     zero-padded input, row-slab layout
    # b1_ref   : (3, Wp*C, Wp*C) bf16 banded conv1 weights (one block per kh)
    # b2_ref   : (3, Wp*C, W*C)  bf16 banded conv2 weights
    # g*/be*   : (1, C) f32           BN affine parameters
    # o_ref    : (N*Hp, W*C) f32      output slab (rows with (r % Hp) >= H junk)
    # stage_ref: (2, N*Hp, Wp*C) f32  row-shift staging scratch (reused)
    Hp, Wp = H + 2, W + 2
    R = N * Hp
    L = Wp * C
    count = float(N * H * W)                      # valid pixels per channel

    x = x_ref[...]                                # (R, L) f32

    # Validity masks: real output pixels live in rows with (r % Hp) < H and,
    # in the padded-column layout, lanes C <= lane < (Wp-1)*C.
    row_valid = (lax.broadcasted_iota(jnp.int32, (R, 1), 0) % Hp) < H
    lane_id = lax.broadcasted_iota(jnp.int32, (1, L), 1)
    col_valid = (lane_id >= C) & (lane_id < (Wp - 1) * C)

    def shifted_rows(act, s, slot):
        """Slab whose row r holds act[r + s]; rows outside [0, R) are zero."""
        if s == 0:
            return act
        if s > 0:
            stage_ref[slot, 0:R - s, :] = act[s:R, :]
            stage_ref[slot, R - s:R, :] = jnp.zeros((s, L), jnp.float32)
        else:
            k = -s
            stage_ref[slot, k:R, :] = act[0:R - k, :]
            stage_ref[slot, 0:k, :] = jnp.zeros((k, L), jnp.float32)
        return stage_ref[slot]

    def conv3x3(act, b_ref, shifts):
        """3x3 SAME conv as 3 banded bf16 matmuls (one per vertical tap)."""
        acc = jnp.zeros((R, b_ref.shape[-1]), jnp.float32)
        slot = 0
        for kh in range(3):
            s = shifts[kh]
            if s == 0:
                tap = act
            else:
                tap = shifted_rows(act, s, slot)
                slot += 1
            acc = acc + jnp.dot(tap.astype(MATMUL_DTYPE), b_ref[kh],
                                preferred_element_type=jnp.float32)
        return acc

    # ---- conv1 + bn1 (batch statistics over valid pixels) + relu -----------
    y1 = conv3x3(x, b1_ref, (0, 1, 2))                        # (R, Wp*C)
    y1m = jnp.where(row_valid, y1, 0.0)   # pad-column lanes of y1 already zero
    sc1, sh1 = _bn_scale_shift(y1m, g1_ref[...], be1_ref[...], count, C)
    # re-zero pad columns / junk rows so they act as conv2's zero padding
    o1 = jnp.where(row_valid & col_valid,
                   jnp.maximum(y1 * sc1 + sh1, 0.0), 0.0)     # (R, Wp*C)

    # ---- conv2 + bn2 --------------------------------------------------------
    y2 = conv3x3(o1, b2_ref, (-1, 0, 1))                      # (R, W*C)
    y2m = jnp.where(row_valid, y2, 0.0)
    sc2, sh2 = _bn_scale_shift(y2m, g2_ref[...], be2_ref[...], count, C)
    res = y2 * sc2 + sh2

    # ---- residual (sliced from the resident padded input) + relu -----------
    ident = x[1:R, C:(Wp - 1) * C]                            # (R-1, W*C) f32
    o_ref[0:R - 1, :] = jnp.maximum(res[0:R - 1, :] + ident, 0.0)
    o_ref[R - 1:R, :] = jnp.zeros((1, W * C), jnp.float32)    # junk row (dropped)


def _stacked_band_weights(w_hwio, W, out_padded):
    """3x3 HWIO conv weights -> banded matrices for the row-slab matmuls.

    Returns B of shape (3, Wp*Cin, Lout) with Wp = W + 2 and
      Lout = Wp*Cout (padded output columns)   if out_padded
      Lout = W*Cout  (unpadded output columns) otherwise,
    so that  out[r] = sum_kh  act[r + kh] @ B[kh]  implements the 3x3 SAME conv
    along the width/channel (lane) axis.
    """
    _, _, c_in, c_out = w_hwio.shape
    wp = W + 2
    kw = jnp.arange(3)[:, None, None]
    wi = jnp.arange(wp)[None, :, None]                  # input padded column
    if out_padded:
        wo = jnp.arange(wp)[None, None, :]              # output padded column
        sel = (wi == wo - 1 + kw) & (wo >= 1) & (wo <= W)
    else:
        wo = jnp.arange(W)[None, None, :]               # output column
        sel = wi == wo + kw
    sel = sel.astype(w_hwio.dtype)                      # (3, Wp, Wout)
    b = jnp.einsum("hkio,kab->haibo", w_hwio, sel)      # (3, Wp, Cin, Wout, Cout)
    return b.reshape(3, wp * c_in, sel.shape[-1] * c_out)


def basic_block(x_nchw, params):
    """NCHW BasicBlock forward through the fused Pallas kernel."""
    x = jnp.transpose(x_nchw, (0, 2, 3, 1)).astype(jnp.float32)      # NHWC
    N, H, W, c_in = x.shape
    w1, w2 = params["w1"], params["w2"]                              # HWIO
    c_out = w1.shape[-1]
    assert c_in == c_out, "identity residual requires Cin == Cout (no downsample)"
    C = c_out
    Hp, Wp = H + 2, W + 2

    # Row-slab layout: rows = n*Hp + padded_row, lanes = padded_col*C + channel.
    x2d = jnp.pad(x, ((0, 0), (1, 1), (1, 1), (0, 0))).reshape(N * Hp, Wp * C)

    b1s = _stacked_band_weights(w1, W, out_padded=True).astype(MATMUL_DTYPE)
    b2s = _stacked_band_weights(w2, W, out_padded=False).astype(MATMUL_DTYPE)

    g1 = params["g1"].reshape(1, C).astype(jnp.float32)
    be1 = params["b1"].reshape(1, C).astype(jnp.float32)
    g2 = params["g2"].reshape(1, C).astype(jnp.float32)
    be2 = params["b2"].reshape(1, C).astype(jnp.float32)

    kernel = functools.partial(_basic_block_kernel, N=N, H=H, W=W, C=C)
    out2d = pl.pallas_call(
        kernel,
        out_shape=jax.ShapeDtypeStruct((N * Hp, W * C), jnp.float32),
        in_specs=[pl.BlockSpec(memory_space=pltpu.MemorySpace.VMEM)] * 7,
        out_specs=pl.BlockSpec(memory_space=pltpu.MemorySpace.VMEM),
        scratch_shapes=[pltpu.VMEM((2, N * Hp, Wp * C), jnp.float32)],
        compiler_params=pltpu.CompilerParams(
            # whole problem is a single VMEM-resident block at this size; give
            # the compiler explicit headroom (well under every chip's VMEM).
            vmem_limit_bytes=32 * 1024 * 1024,
        ),
    )(x2d, b1s, g1, be1, b2s, g2, be2)

    out = out2d.reshape(N, Hp, W, C)[:, :H]              # drop the 2 junk rows/image
    return jnp.transpose(out, (0, 3, 1, 2))              # back to NCHW


def ref_basic_block(x_nchw, params):
    """Pure-JAX reference (lax.conv).  Conv operands are cast to bf16 with f32
    accumulation, mirroring the kernel's MXU-native precision choice; all BN /
    residual math stays in f32."""
    x = jnp.transpose(x_nchw, (0, 2, 3, 1)).astype(jnp.float32)

    def conv(v, w):
        return lax.conv_general_dilated(
            v.astype(MATMUL_DTYPE), w.astype(MATMUL_DTYPE),
            window_strides=(1, 1), padding="SAME",
            dimension_numbers=("NHWC", "HWIO", "NHWC"),
            preferred_element_type=jnp.float32)

    def bn(v, g, b):
        m = jnp.mean(v, axis=(0, 1, 2))
        var = jnp.mean((v - m) ** 2, axis=(0, 1, 2))
        return (v - m) * lax.rsqrt(var + EPS) * g + b

    out = jnp.maximum(bn(conv(x, params["w1"]), params["g1"], params["b1"]), 0.0)
    out = bn(conv(out, params["w2"]), params["g2"], params["b2"])
    out = jnp.maximum(out + x, 0.0)
    return jnp.transpose(out, (0, 3, 1, 2))


if __name__ == "__main__":
    key = jax.random.PRNGKey(0)
    k1, k2, k3, k4, k5, k6 = jax.random.split(key, 6)

    N, Cin, H, W = 2, 4, 16, 16
    Cout = Cin  # stride=1, downsample=None -> identity residual requires Cin == Cout

    x = jax.random.normal(k1, (N, Cin, H, W), jnp.float32)

    # Conv weights declared in PyTorch as OIHW (Cout, Cin, 3, 3); converted to HWIO.
    w1_oihw = jax.random.normal(k2, (Cout, Cin, 3, 3), jnp.float32) / (3 * 3 * Cin) ** 0.5
    w2_oihw = jax.random.normal(k3, (Cout, Cout, 3, 3), jnp.float32) / (3 * 3 * Cout) ** 0.5

    params = {
        "w1": jnp.transpose(w1_oihw, (2, 3, 1, 0)),
        "w2": jnp.transpose(w2_oihw, (2, 3, 1, 0)),
        # BatchNorm affine params (PyTorch default init is gamma=1, beta=0;
        # small deterministic perturbation used so they exercise the math).
        "g1": 1.0 + 0.1 * jax.random.normal(k4, (Cout,), jnp.float32),
        "b1": 0.1 * jax.random.normal(k5, (Cout,), jnp.float32),
        "g2": 1.0 + 0.1 * jax.random.normal(k6, (Cout,), jnp.float32),
        "b2": jnp.zeros((Cout,), jnp.float32),
    }

    out = jax.block_until_ready(basic_block(x, params))
    ref = jax.block_until_ready(ref_basic_block(x, params))

    assert out.shape == (N, Cout, H, W)
    err = jnp.abs(out - ref)
    max_err = float(jnp.max(err))
    mean_err = float(jnp.mean(err))
    # Both kernel and reference use bf16 conv operands (f32 accumulation), but
    # the conv2 input is re-quantized from slightly different f32 values, so a
    # rare 1-ulp bf16 flip is possible: loose max-error bound, tight mean bound.
    if not (max_err < 3e-2 and mean_err < 1e-3):
        raise AssertionError(
            f"Pallas kernel mismatch vs reference: max={max_err:.3e} mean={mean_err:.3e}")

    print("KERNEL_OK")
</pallas_src>

<mosaic_0001>
module attributes {stable_mosaic.version = 11 : i64} {
  func.func @_basic_block_kernel(%arg0: memref<36x72xf32, #tpu.memory_space<vmem>>, %arg1: memref<3x72x72xbf16, #tpu.memory_space<vmem>>, %arg2: memref<1x4xf32, #tpu.memory_space<vmem>>, %arg3: memref<1x4xf32, #tpu.memory_space<vmem>>, %arg4: memref<3x72x64xbf16, #tpu.memory_space<vmem>>, %arg5: memref<1x4xf32, #tpu.memory_space<vmem>>, %arg6: memref<1x4xf32, #tpu.memory_space<vmem>>, %arg7: memref<36x64xf32, #tpu.memory_space<vmem>>, %arg8: memref<2x36x72xf32, #tpu.memory_space<vmem>>) attributes {dimension_semantics = [], scalar_prefetch = 0 : i64, scratch_operands = 1 : i64, tpu.core_type = #tpu.core_type<tc>} {
    %c0 = arith.constant 0 : index
    %c0_0 = arith.constant 0 : index
    %0 = vector.load %arg0[%c0, %c0_0] : memref<36x72xf32, #tpu.memory_space<vmem>>, vector<36x72xf32>
    %1 = tpu.iota {dimensions = array<i32: 0>} : vector<36x1xi32>
    %c18_i32 = arith.constant 18 : i32
    %c0_i32 = arith.constant 0 : i32
    %2 = arith.cmpi eq, %c18_i32, %c0_i32 : i32
    %c1_i32 = arith.constant 1 : i32
    %3 = arith.select %2, %c1_i32, %c18_i32 : i32
    %4 = vector.broadcast %3 : i32 to vector<36x1xi32>
    %5 = arith.remsi %1, %4 : vector<36x1xi32>
    %c0_i32_1 = arith.constant 0 : i32
    %6 = vector.broadcast %c0_i32_1 : i32 to vector<36x1xi32>
    %7 = arith.cmpi ne, %5, %6 : vector<36x1xi32>
    %c0_i32_2 = arith.constant 0 : i32
    %8 = vector.broadcast %c0_i32_2 : i32 to vector<36x1xi32>
    %9 = arith.cmpi slt, %5, %8 : vector<36x1xi32>
    %c0_i32_3 = arith.constant 0 : i32
    %10 = arith.cmpi slt, %3, %c0_i32_3 : i32
    %11 = vector.broadcast %10 : i1 to vector<36x1xi1>
    %12 = vector.broadcast %11 : vector<36x1xi1> to vector<36x1xi1>
    %13 = arith.xori %9, %12 : vector<36x1xi1>
    %14 = arith.andi %13, %7 : vector<36x1xi1>
    %15 = vector.broadcast %3 : i32 to vector<36x1xi32>
    %16 = arith.addi %5, %15 : vector<36x1xi32>
    %17 = arith.select %14, %16, %5 : vector<36x1xi1>, vector<36x1xi32>
    %c16_i32 = arith.constant 16 : i32
    %18 = vector.broadcast %c16_i32 : i32 to vector<36x1xi32>
    %19 = arith.cmpi slt, %17, %18 : vector<36x1xi32>
    %20 = tpu.iota {dimensions = array<i32: 1>} : vector<1x72xi32>
    %c4_i32 = arith.constant 4 : i32
    %21 = vector.broadcast %c4_i32 : i32 to vector<1x72xi32>
    %22 = arith.cmpi sge, %20, %21 : vector<1x72xi32>
    %c68_i32 = arith.constant 68 : i32
    %23 = vector.broadcast %c68_i32 : i32 to vector<1x72xi32>
    %24 = arith.cmpi slt, %20, %23 : vector<1x72xi32>
    %25 = arith.andi %22, %24 : vector<1x72xi1>
    %cst = arith.constant 0.000000e+00 : f32
    %26 = vector.broadcast %cst : f32 to vector<36x72xf32>
    %27 = arith.truncf %0 : vector<36x72xf32> to vector<36x72xbf16>
    %c0_4 = arith.constant 0 : index
    %c0_5 = arith.constant 0 : index
    %c0_6 = arith.constant 0 : index
    %28 = vector.load %arg1[%c0_4, %c0_5, %c0_6] : memref<3x72x72xbf16, #tpu.memory_space<vmem>>, vector<1x72x72xbf16>
    %29 = vector.shape_cast %28 : vector<1x72x72xbf16> to vector<72x72xbf16>
    %cst_7 = arith.constant dense<0.000000e+00> : vector<36x72xf32>
    %30 = tpu.matmul %27, %29, %cst_7 {dimension_numbers = #tpu.dot_dimension_numbers<[1], [0], [0], [1], [0, 0, 1, 1], [], []>} : vector<36x72xbf16>, vector<72x72xbf16>, vector<36x72xf32> -> vector<36x72xf32>
    %31 = arith.addf %26, %30 : vector<36x72xf32>
    %32 = vector.extract_strided_slice %0 {offsets = [1, 0], sizes = [35, 72], strides = [1, 1]} : vector<36x72xf32> to vector<35x72xf32>
    %c0_8 = arith.constant 0 : index
    %c0_9 = arith.constant 0 : index
    %c0_10 = arith.constant 0 : index
    %33 = vector.load %arg8[%c0_8, %c0_9, %c0_10] : memref<2x36x72xf32, #tpu.memory_space<vmem>>, vector<1x35x72xf32>
    %34 = vector.shape_cast %33 : vector<1x35x72xf32> to vector<35x72xf32>
    %35 = vector.shape_cast %32 : vector<35x72xf32> to vector<1x35x72xf32>
    tpu.vector_store %arg8[%c0_8, %c0_9, %c0_10], %35 {strides = array<i32>} : memref<2x36x72xf32, #tpu.memory_space<vmem>>, vector<1x35x72xf32>,
    %cst_11 = arith.constant 0.000000e+00 : f32
    %36 = vector.broadcast %cst_11 : f32 to vector<1x72xf32>
    %c0_12 = arith.constant 0 : index
    %c35 = arith.constant 35 : index
    %c0_13 = arith.constant 0 : index
    %37 = vector.load %arg8[%c0_12, %c35, %c0_13] : memref<2x36x72xf32, #tpu.memory_space<vmem>>, vector<1x1x72xf32>
    %38 = vector.shape_cast %37 : vector<1x1x72xf32> to vector<1x72xf32>
    %39 = vector.shape_cast %36 : vector<1x72xf32> to vector<1x1x72xf32>
    tpu.vector_store %arg8[%c0_12, %c35, %c0_13], %39 {strides = array<i32>} : memref<2x36x72xf32, #tpu.memory_space<vmem>>, vector<1x1x72xf32>,
    %c0_14 = arith.constant 0 : index
    %c0_15 = arith.constant 0 : index
    %c0_16 = arith.constant 0 : index
    %40 = vector.load %arg8[%c0_14, %c0_15, %c0_16] : memref<2x36x72xf32, #tpu.memory_space<vmem>>, vector<1x36x72xf32>
    %41 = vector.shape_cast %40 : vector<1x36x72xf32> to vector<36x72xf32>
    %42 = arith.truncf %41 : vector<36x72xf32> to vector<36x72xbf16>
    %c1 = arith.constant 1 : index
    %c0_17 = arith.constant 0 : index
    %c0_18 = arith.constant 0 : index
    %43 = vector.load %arg1[%c1, %c0_17, %c0_18] : memref<3x72x72xbf16, #tpu.memory_space<vmem>>, vector<1x72x72xbf16>
    %44 = vector.shape_cast %43 : vector<1x72x72xbf16> to vector<72x72xbf16>
    %cst_19 = arith.constant dense<0.000000e+00> : vector<36x72xf32>
    %45 = tpu.matmul %42, %44, %cst_19 {dimension_numbers = #tpu.dot_dimension_numbers<[1], [0], [0], [1], [0, 0, 1, 1], [], []>} : vector<36x72xbf16>, vector<72x72xbf16>, vector<36x72xf32> -> vector<36x72xf32>
    %46 = arith.addf %31, %45 : vector<36x72xf32>
    %47 = vector.extract_strided_slice %0 {offsets = [2, 0], sizes = [34, 72], strides = [1, 1]} : vector<36x72xf32> to vector<34x72xf32>
    %c1_20 = arith.constant 1 : index
    %c0_21 = arith.constant 0 : index
    %c0_22 = arith.constant 0 : index
    %48 = vector.load %arg8[%c1_20, %c0_21, %c0_22] : memref<2x36x72xf32, #tpu.memory_space<vmem>>, vector<1x34x72xf32>
    %49 = vector.shape_cast %48 : vector<1x34x72xf32> to vector<34x72xf32>
    %50 = vector.shape_cast %47 : vector<34x72xf32> to vector<1x34x72xf32>
    tpu.vector_store %arg8[%c1_20, %c0_21, %c0_22], %50 {strides = array<i32>} : memref<2x36x72xf32, #tpu.memory_space<vmem>>, vector<1x34x72xf32>,
    %cst_23 = arith.constant 0.000000e+00 : f32
    %51 = vector.broadcast %cst_23 : f32 to vector<2x72xf32>
    %c1_24 = arith.constant 1 : index
    %c34 = arith.constant 34 : index
    %c0_25 = arith.constant 0 : index
    %52 = vector.load %arg8[%c1_24, %c34, %c0_25] : memref<2x36x72xf32, #tpu.memory_space<vmem>>, vector<1x2x72xf32>
    %53 = vector.shape_cast %52 : vector<1x2x72xf32> to vector<2x72xf32>
    %54 = vector.shape_cast %51 : vector<2x72xf32> to vector<1x2x72xf32>
    tpu.vector_store %arg8[%c1_24, %c34, %c0_25], %54 {strides = array<i32>} : memref<2x36x72xf32, #tpu.memory_space<vmem>>, vector<1x2x72xf32>,
    %c1_26 = arith.constant 1 : index
    %c0_27 = arith.constant 0 : index
    %c0_28 = arith.constant 0 : index
    %55 = vector.load %arg8[%c1_26, %c0_27, %c0_28] : memref<2x36x72xf32, #tpu.memory_space<vmem>>, vector<1x36x72xf32>
    %56 = vector.shape_cast %55 : vector<1x36x72xf32> to vector<36x72xf32>
    %57 = arith.truncf %56 : vector<36x72xf32> to vector<36x72xbf16>
    %c2 = arith.constant 2 : index
    %c0_29 = arith.constant 0 : index
    %c0_30 = arith.constant 0 : index
    %58 = vector.load %arg1[%c2, %c0_29, %c0_30] : memref<3x72x72xbf16, #tpu.memory_space<vmem>>, vector<1x72x72xbf16>
    %59 = vector.shape_cast %58 : vector<1x72x72xbf16> to vector<72x72xbf16>
    %cst_31 = arith.constant dense<0.000000e+00> : vector<36x72xf32>
    %60 = tpu.matmul %57, %59, %cst_31 {dimension_numbers = #tpu.dot_dimension_numbers<[1], [0], [0], [1], [0, 0, 1, 1], [], []>} : vector<36x72xbf16>, vector<72x72xbf16>, vector<36x72xf32> -> vector<36x72xf32>
    %61 = arith.addf %46, %60 : vector<36x72xf32>
    %cst_32 = arith.constant 0.000000e+00 : f32
    %62 = vector.shape_cast %19 : vector<36x1xi1> to vector<36x1xi1>
    %63 = vector.broadcast %62 : vector<36x1xi1> to vector<36x72xi1>
    %64 = vector.broadcast %cst_32 : f32 to vector<36x72xf32>
    %65 = arith.select %63, %61, %64 : vector<36x72xi1>, vector<36x72xf32>
    %c0_33 = arith.constant 0 : index
    %c0_34 = arith.constant 0 : index
    %66 = vector.load %arg2[%c0_33, %c0_34] : memref<1x4xf32, #tpu.memory_space<vmem>>, vector<1x4xf32>
    %c0_35 = arith.constant 0 : index
    %c0_36 = arith.constant 0 : index
    %67 = vector.load %arg3[%c0_35, %c0_36] : memref<1x4xf32, #tpu.memory_space<vmem>>, vector<1x4xf32>
    %cst_37 = arith.constant dense<0.000000e+00> : vector<72xf32>
    %68 = vector.multi_reduction <add>, %65, %cst_37 [0] : vector<36x72xf32> to vector<72xf32>
    %69 = vector.shape_cast %68 : vector<72xf32> to vector<1x72xf32>
    %70 = arith.mulf %65, %65 : vector<36x72xf32>
    %cst_38 = arith.constant dense<0.000000e+00> : vector<72xf32>
    %71 = vector.multi_reduction <add>, %70, %cst_38 [0] : vector<36x72xf32> to vector<72xf32>
    %72 = vector.shape_cast %71 : vector<72xf32> to vector<1x72xf32>
    %73 = tpu.iota {dimensions = array<i32: 1>} : vector<1x72xi32>
    %c4_i32_39 = arith.constant 4 : i32
    %c0_i32_40 = arith.constant 0 : i32
    %74 = arith.cmpi eq, %c4_i32_39, %c0_i32_40 : i32
    %c1_i32_41 = arith.constant 1 : i32
    %75 = arith.select %74, %c1_i32_41, %c4_i32_39 : i32
    %76 = vector.broadcast %75 : i32 to vector<1x72xi32>
    %77 = arith.remsi %73, %76 : vector<1x72xi32>
    %c0_i32_42 = arith.constant 0 : i32
    %78 = vector.broadcast %c0_i32_42 : i32 to vector<1x72xi32>
    %79 = arith.cmpi ne, %77, %78 : vector<1x72xi32>
    %c0_i32_43 = arith.constant 0 : i32
    %80 = vector.broadcast %c0_i32_43 : i32 to vector<1x72xi32>
    %81 = arith.cmpi slt, %77, %80 : vector<1x72xi32>
    %c0_i32_44 = arith.constant 0 : i32
    %82 = arith.cmpi slt, %75, %c0_i32_44 : i32
    %83 = vector.broadcast %82 : i1 to vector<1x72xi1>
    %84 = vector.broadcast %83 : vector<1x72xi1> to vector<1x72xi1>
    %85 = arith.xori %81, %84 : vector<1x72xi1>
    %86 = arith.andi %85, %79 : vector<1x72xi1>
    %87 = vector.broadcast %75 : i32 to vector<1x72xi32>
    %88 = arith.addi %77, %87 : vector<1x72xi32>
    %89 = arith.select %86, %88, %77 : vector<1x72xi1>, vector<1x72xi32>
    %cst_45 = arith.constant 0.000000e+00 : f32
    %90 = vector.broadcast %cst_45 : f32 to vector<1x72xf32>
    %cst_46 = arith.constant 0.000000e+00 : f32
    %91 = vector.broadcast %cst_46 : f32 to vector<1x72xf32>
    %c0_i32_47 = arith.constant 0 : i32
    %92 = vector.broadcast %c0_i32_47 : i32 to vector<1x72xi32>
    %93 = arith.cmpi eq, %89, %92 : vector<1x72xi32>
    %cst_48 = arith.constant 0.000000e+00 : f32
    %94 = vector.broadcast %cst_48 : f32 to vector<1x72xf32>
    %95 = arith.select %93, %69, %94 : vector<1x72xi1>, vector<1x72xf32>
    %cst_49 = arith.constant dense<0.000000e+00> : vector<1xf32>
    %96 = vector.multi_reduction <add>, %95, %cst_49 [1] : vector<1x72xf32> to vector<1xf32>
    %97 = vector.shape_cast %96 : vector<1xf32> to vector<1x1xf32>
    %cst_50 = arith.constant 0.000000e+00 : f32
    %98 = vector.broadcast %cst_50 : f32 to vector<1x72xf32>
    %99 = arith.select %93, %72, %98 : vector<1x72xi1>, vector<1x72xf32>
    %cst_51 = arith.constant dense<0.000000e+00> : vector<1xf32>
    %100 = vector.multi_reduction <add>, %99, %cst_51 [1] : vector<1x72xf32> to vector<1xf32>
    %101 = vector.shape_cast %100 : vector<1xf32> to vector<1x1xf32>
    %cst_52 = arith.constant 0.001953125 : f32
    %102 = vector.broadcast %cst_52 : f32 to vector<1x1xf32>
    %103 = arith.mulf %97, %102 : vector<1x1xf32>
    %cst_53 = arith.constant 0.001953125 : f32
    %104 = vector.broadcast %cst_53 : f32 to vector<1x1xf32>
    %105 = arith.mulf %101, %104 : vector<1x1xf32>
    %106 = arith.mulf %103, %103 : vector<1x1xf32>
    %107 = arith.subf %105, %106 : vector<1x1xf32>
    %108 = vector.extract_strided_slice %66 {offsets = [0, 0], sizes = [1, 1], strides = [1, 1]} : vector<1x4xf32> to vector<1x1xf32>
    %cst_54 = arith.constant 9.99999974E-6 : f32
    %109 = vector.broadcast %cst_54 : f32 to vector<1x1xf32>
    %110 = arith.addf %107, %109 : vector<1x1xf32>
    %111 = math.rsqrt %110 : vector<1x1xf32>
    %112 = arith.mulf %108, %111 : vector<1x1xf32>
    %113 = vector.extract_strided_slice %67 {offsets = [0, 0], sizes = [1, 1], strides = [1, 1]} : vector<1x4xf32> to vector<1x1xf32>
    %114 = arith.mulf %103, %112 : vector<1x1xf32>
    %115 = arith.subf %113, %114 : vector<1x1xf32>
    %cst_55 = arith.constant 0.000000e+00 : f32
    %116 = vector.shape_cast %112 : vector<1x1xf32> to vector<1x1xf32>
    %117 = vector.broadcast %116 : vector<1x1xf32> to vector<1x72xf32>
    %118 = vector.broadcast %cst_55 : f32 to vector<1x72xf32>
    %119 = arith.select %93, %117, %118 : vector<1x72xi1>, vector<1x72xf32>
    %120 = arith.addf %90, %119 : vector<1x72xf32>
    %cst_56 = arith.constant 0.000000e+00 : f32
    %121 = vector.shape_cast %115 : vector<1x1xf32> to vector<1x1xf32>
    %122 = vector.broadcast %121 : vector<1x1xf32> to vector<1x72xf32>
    %123 = vector.broadcast %cst_56 : f32 to vector<1x72xf32>
    %124 = arith.select %93, %122, %123 : vector<1x72xi1>, vector<1x72xf32>
    %125 = arith.addf %91, %124 : vector<1x72xf32>
    %c1_i32_57 = arith.constant 1 : i32
    %126 = vector.broadcast %c1_i32_57 : i32 to vector<1x72xi32>
    %127 = arith.cmpi eq, %89, %126 : vector<1x72xi32>
    %cst_58 = arith.constant 0.000000e+00 : f32
    %128 = vector.broadcast %cst_58 : f32 to vector<1x72xf32>
    %129 = arith.select %127, %69, %128 : vector<1x72xi1>, vector<1x72xf32>
    %cst_59 = arith.constant dense<0.000000e+00> : vector<1xf32>
    %130 = vector.multi_reduction <add>, %129, %cst_59 [1] : vector<1x72xf32> to vector<1xf32>
    %131 = vector.shape_cast %130 : vector<1xf32> to vector<1x1xf32>
    %cst_60 = arith.constant 0.000000e+00 : f32
    %132 = vector.broadcast %cst_60 : f32 to vector<1x72xf32>
    %133 = arith.select %127, %72, %132 : vector<1x72xi1>, vector<1x72xf32>
    %cst_61 = arith.constant dense<0.000000e+00> : vector<1xf32>
    %134 = vector.multi_reduction <add>, %133, %cst_61 [1] : vector<1x72xf32> to vector<1xf32>
    %135 = vector.shape_cast %134 : vector<1xf32> to vector<1x1xf32>
    %cst_62 = arith.constant 0.001953125 : f32
    %136 = vector.broadcast %cst_62 : f32 to vector<1x1xf32>
    %137 = arith.mulf %131, %136 : vector<1x1xf32>
    %cst_63 = arith.constant 0.001953125 : f32
    %138 = vector.broadcast %cst_63 : f32 to vector<1x1xf32>
    %139 = arith.mulf %135, %138 : vector<1x1xf32>
    %140 = arith.mulf %137, %137 : vector<1x1xf32>
    %141 = arith.subf %139, %140 : vector<1x1xf32>
    %142 = vector.extract_strided_slice %66 {offsets = [0, 1], sizes = [1, 1], strides = [1, 1]} : vector<1x4xf32> to vector<1x1xf32>
    %cst_64 = arith.constant 9.99999974E-6 : f32
    %143 = vector.broadcast %cst_64 : f32 to vector<1x1xf32>
    %144 = arith.addf %141, %143 : vector<1x1xf32>
    %145 = math.rsqrt %144 : vector<1x1xf32>
    %146 = arith.mulf %142, %145 : vector<1x1xf32>
    %147 = vector.extract_strided_slice %67 {offsets = [0, 1], sizes = [1, 1], strides = [1, 1]} : vector<1x4xf32> to vector<1x1xf32>
    %148 = arith.mulf %137, %146 : vector<1x1xf32>
    %149 = arith.subf %147, %148 : vector<1x1xf32>
    %cst_65 = arith.constant 0.000000e+00 : f32
    %150 = vector.shape_cast %146 : vector<1x1xf32> to vector<1x1xf32>
    %151 = vector.broadcast %150 : vector<1x1xf32> to vector<1x72xf32>
    %152 = vector.broadcast %cst_65 : f32 to vector<1x72xf32>
    %153 = arith.select %127, %151, %152 : vector<1x72xi1>, vector<1x72xf32>
    %154 = arith.addf %120, %153 : vector<1x72xf32>
    %cst_66 = arith.constant 0.000000e+00 : f32
    %155 = vector.shape_cast %149 : vector<1x1xf32> to vector<1x1xf32>
    %156 = vector.broadcast %155 : vector<1x1xf32> to vector<1x72xf32>
    %157 = vector.broadcast %cst_66 : f32 to vector<1x72xf32>
    %158 = arith.select %127, %156, %157 : vector<1x72xi1>, vector<1x72xf32>
    %159 = arith.addf %125, %158 : vector<1x72xf32>
    %c2_i32 = arith.constant 2 : i32
    %160 = vector.broadcast %c2_i32 : i32 to vector<1x72xi32>
    %161 = arith.cmpi eq, %89, %160 : vector<1x72xi32>
    %cst_67 = arith.constant 0.000000e+00 : f32
    %162 = vector.broadcast %cst_67 : f32 to vector<1x72xf32>
    %163 = arith.select %161, %69, %162 : vector<1x72xi1>, vector<1x72xf32>
    %cst_68 = arith.constant dense<0.000000e+00> : vector<1xf32>
    %164 = vector.multi_reduction <add>, %163, %cst_68 [1] : vector<1x72xf32> to vector<1xf32>
    %165 = vector.shape_cast %164 : vector<1xf32> to vector<1x1xf32>
    %cst_69 = arith.constant 0.000000e+00 : f32
    %166 = vector.broadcast %cst_69 : f32 to vector<1x72xf32>
    %167 = arith.select %161, %72, %166 : vector<1x72xi1>, vector<1x72xf32>
    %cst_70 = arith.constant dense<0.000000e+00> : vector<1xf32>
    %168 = vector.multi_reduction <add>, %167, %cst_70 [1] : vector<1x72xf32> to vector<1xf32>
    %169 = vector.shape_cast %168 : vector<1xf32> to vector<1x1xf32>
    %cst_71 = arith.constant 0.001953125 : f32
    %170 = vector.broadcast %cst_71 : f32 to vector<1x1xf32>
    %171 = arith.mulf %165, %170 : vector<1x1xf32>
    %cst_72 = arith.constant 0.001953125 : f32
    %172 = vector.broadcast %cst_72 : f32 to vector<1x1xf32>
    %173 = arith.mulf %169, %172 : vector<1x1xf32>
    %174 = arith.mulf %171, %171 : vector<1x1xf32>
    %175 = arith.subf %173, %174 : vector<1x1xf32>
    %176 = vector.extract_strided_slice %66 {offsets = [0, 2], sizes = [1, 1], strides = [1, 1]} : vector<1x4xf32> to vector<1x1xf32>
    %cst_73 = arith.constant 9.99999974E-6 : f32
    %177 = vector.broadcast %cst_73 : f32 to vector<1x1xf32>
    %178 = arith.addf %175, %177 : vector<1x1xf32>
    %179 = math.rsqrt %178 : vector<1x1xf32>
    %180 = arith.mulf %176, %179 : vector<1x1xf32>
    %181 = vector.extract_strided_slice %67 {offsets = [0, 2], sizes = [1, 1], strides = [1, 1]} : vector<1x4xf32> to vector<1x1xf32>
    %182 = arith.mulf %171, %180 : vector<1x1xf32>
    %183 = arith.subf %181, %182 : vector<1x1xf32>
    %cst_74 = arith.constant 0.000000e+00 : f32
    %184 = vector.shape_cast %180 : vector<1x1xf32> to vector<1x1xf32>
    %185 = vector.broadcast %184 : vector<1x1xf32> to vector<1x72xf32>
    %186 = vector.broadcast %cst_74 : f32 to vector<1x72xf32>
    %187 = arith.select %161, %185, %186 : vector<1x72xi1>, vector<1x72xf32>
    %188 = arith.addf %154, %187 : vector<1x72xf32>
    %cst_75 = arith.constant 0.000000e+00 : f32
    %189 = vector.shape_cast %183 : vector<1x1xf32> to vector<1x1xf32>
    %190 = vector.broadcast %189 : vector<1x1xf32> to vector<1x72xf32>
    %191 = vector.broadcast %cst_75 : f32 to vector<1x72xf32>
    %192 = arith.select %161, %190, %191 : vector<1x72xi1>, vector<1x72xf32>
    %193 = arith.addf %159, %192 : vector<1x72xf32>
    %c3_i32 = arith.constant 3 : i32
    %194 = vector.broadcast %c3_i32 : i32 to vector<1x72xi32>
    %195 = arith.cmpi eq, %89, %194 : vector<1x72xi32>
    %cst_76 = arith.constant 0.000000e+00 : f32
    %196 = vector.broadcast %cst_76 : f32 to vector<1x72xf32>
    %197 = arith.select %195, %69, %196 : vector<1x72xi1>, vector<1x72xf32>
    %cst_77 = arith.constant dense<0.000000e+00> : vector<1xf32>
    %198 = vector.multi_reduction <add>, %197, %cst_77 [1] : vector<1x72xf32> to vector<1xf32>
    %199 = vector.shape_cast %198 : vector<1xf32> to vector<1x1xf32>
    %cst_78 = arith.constant 0.000000e+00 : f32
    %200 = vector.broadcast %cst_78 : f32 to vector<1x72xf32>
    %201 = arith.select %195, %72, %200 : vector<1x72xi1>, vector<1x72xf32>
    %cst_79 = arith.constant dense<0.000000e+00> : vector<1xf32>
    %202 = vector.multi_reduction <add>, %201, %cst_79 [1] : vector<1x72xf32> to vector<1xf32>
    %203 = vector.shape_cast %202 : vector<1xf32> to vector<1x1xf32>
    %cst_80 = arith.constant 0.001953125 : f32
    %204 = vector.broadcast %cst_80 : f32 to vector<1x1xf32>
    %205 = arith.mulf %199, %204 : vector<1x1xf32>
    %cst_81 = arith.constant 0.001953125 : f32
    %206 = vector.broadcast %cst_81 : f32 to vector<1x1xf32>
    %207 = arith.mulf %203, %206 : vector<1x1xf32>
    %208 = arith.mulf %205, %205 : vector<1x1xf32>
    %209 = arith.subf %207, %208 : vector<1x1xf32>
    %210 = vector.extract_strided_slice %66 {offsets = [0, 3], sizes = [1, 1], strides = [1, 1]} : vector<1x4xf32> to vector<1x1xf32>
    %cst_82 = arith.constant 9.99999974E-6 : f32
    %211 = vector.broadcast %cst_82 : f32 to vector<1x1xf32>
    %212 = arith.addf %209, %211 : vector<1x1xf32>
    %213 = math.rsqrt %212 : vector<1x1xf32>
    %214 = arith.mulf %210, %213 : vector<1x1xf32>
    %215 = vector.extract_strided_slice %67 {offsets = [0, 3], sizes = [1, 1], strides = [1, 1]} : vector<1x4xf32> to vector<1x1xf32>
    %216 = arith.mulf %205, %214 : vector<1x1xf32>
    %217 = arith.subf %215, %216 : vector<1x1xf32>
    %cst_83 = arith.constant 0.000000e+00 : f32
    %218 = vector.shape_cast %214 : vector<1x1xf32> to vector<1x1xf32>
    %219 = vector.broadcast %218 : vector<1x1xf32> to vector<1x72xf32>
    %220 = vector.broadcast %cst_83 : f32 to vector<1x72xf32>
    %221 = arith.select %195, %219, %220 : vector<1x72xi1>, vector<1x72xf32>
    %222 = arith.addf %188, %221 : vector<1x72xf32>
    %cst_84 = arith.constant 0.000000e+00 : f32
    %223 = vector.shape_cast %217 : vector<1x1xf32> to vector<1x1xf32>
    %224 = vector.broadcast %223 : vector<1x1xf32> to vector<1x72xf32>
    %225 = vector.broadcast %cst_84 : f32 to vector<1x72xf32>
    %226 = arith.select %195, %224, %225 : vector<1x72xi1>, vector<1x72xf32>
    %227 = arith.addf %193, %226 : vector<1x72xf32>
    %228 = vector.broadcast %19 : vector<36x1xi1> to vector<36x72xi1>
    %229 = vector.broadcast %25 : vector<1x72xi1> to vector<36x72xi1>
    %230 = arith.andi %228, %229 : vector<36x72xi1>
    %231 = vector.broadcast %222 : vector<1x72xf32> to vector<36x72xf32>
    %232 = arith.mulf %61, %231 : vector<36x72xf32>
    %233 = vector.broadcast %227 : vector<1x72xf32> to vector<36x72xf32>
    %234 = arith.addf %232, %233 : vector<36x72xf32>
    %cst_85 = arith.constant 0.000000e+00 : f32
    %235 = vector.broadcast %cst_85 : f32 to vector<36x72xf32>
    %236 = arith.maximumf %234, %235 : vector<36x72xf32>
    %cst_86 = arith.constant 0.000000e+00 : f32
    %237 = vector.broadcast %cst_86 : f32 to vector<36x72xf32>
    %238 = arith.select %230, %236, %237 : vector<36x72xi1>, vector<36x72xf32>
    %cst_87 = arith.constant 0.000000e+00 : f32
    %239 = vector.broadcast %cst_87 : f32 to vector<36x64xf32>
    %240 = vector.extract_strided_slice %238 {offsets = [0, 0], sizes = [35, 72], strides = [1, 1]} : vector<36x72xf32> to vector<35x72xf32>
    %c0_88 = arith.constant 0 : index
    %c1_89 = arith.constant 1 : index
    %c0_90 = arith.constant 0 : index
    %241 = vector.load %arg8[%c0_88, %c1_89, %c0_90] : memref<2x36x72xf32, #tpu.memory_space<vmem>>, vector<1x35x72xf32>
    %242 = vector.shape_cast %241 : vector<1x35x72xf32> to vector<35x72xf32>
    %243 = vector.shape_cast %240 : vector<35x72xf32> to vector<1x35x72xf32>
    tpu.vector_store %arg8[%c0_88, %c1_89, %c0_90], %243 {strides = array<i32>} : memref<2x36x72xf32, #tpu.memory_space<vmem>>, vector<1x35x72xf32>,
    %cst_91 = arith.constant 0.000000e+00 : f32
    %244 = vector.broadcast %cst_91 : f32 to vector<1x72xf32>
    %c0_92 = arith.constant 0 : index
    %c0_93 = arith.constant 0 : index
    %c0_94 = arith.constant 0 : index
    %245 = vector.load %arg8[%c0_92, %c0_93, %c0_94] : memref<2x36x72xf32, #tpu.memory_space<vmem>>, vector<1x1x72xf32>
    %246 = vector.shape_cast %245 : vector<1x1x72xf32> to vector<1x72xf32>
    %247 = vector.shape_cast %244 : vector<1x72xf32> to vector<1x1x72xf32>
    tpu.vector_store %arg8[%c0_92, %c0_93, %c0_94], %247 {strides = array<i32>} : memref<2x36x72xf32, #tpu.memory_space<vmem>>, vector<1x1x72xf32>,
    %c0_95 = arith.constant 0 : index
    %c0_96 = arith.constant 0 : index
    %c0_97 = arith.constant 0 : index
    %248 = vector.load %arg8[%c0_95, %c0_96, %c0_97] : memref<2x36x72xf32, #tpu.memory_space<vmem>>, vector<1x36x72xf32>
    %249 = vector.shape_cast %248 : vector<1x36x72xf32> to vector<36x72xf32>
    %250 = arith.truncf %249 : vector<36x72xf32> to vector<36x72xbf16>
    %c0_98 = arith.constant 0 : index
    %c0_99 = arith.constant 0 : index
    %c0_100 = arith.constant 0 : index
    %251 = vector.load %arg4[%c0_98, %c0_99, %c0_100] : memref<3x72x64xbf16, #tpu.memory_space<vmem>>, vector<1x72x64xbf16>
    %252 = vector.shape_cast %251 : vector<1x72x64xbf16> to vector<72x64xbf16>
    %cst_101 = arith.constant dense<0.000000e+00> : vector<36x64xf32>
    %253 = tpu.matmul %250, %252, %cst_101 {dimension_numbers = #tpu.dot_dimension_numbers<[1], [0], [0], [1], [0, 0, 1, 1], [], []>} : vector<36x72xbf16>, vector<72x64xbf16>, vector<36x64xf32> -> vector<36x64xf32>
    %254 = arith.addf %239, %253 : vector<36x64xf32>
    %255 = arith.truncf %238 : vector<36x72xf32> to vector<36x72xbf16>
    %c1_102 = arith.constant 1 : index
    %c0_103 = arith.constant 0 : index
    %c0_104 = arith.constant 0 : index
    %256 = vector.load %arg4[%c1_102, %c0_103, %c0_104] : memref<3x72x64xbf16, #tpu.memory_space<vmem>>, vector<1x72x64xbf16>
    %257 = vector.shape_cast %256 : vector<1x72x64xbf16> to vector<72x64xbf16>
    %cst_105 = arith.constant dense<0.000000e+00> : vector<36x64xf32>
    %258 = tpu.matmul %255, %257, %cst_105 {dimension_numbers = #tpu.dot_dimension_numbers<[1], [0], [0], [1], [0, 0, 1, 1], [], []>} : vector<36x72xbf16>, vector<72x64xbf16>, vector<36x64xf32> -> vector<36x64xf32>
    %259 = arith.addf %254, %258 : vector<36x64xf32>
    %260 = vector.extract_strided_slice %238 {offsets = [1, 0], sizes = [35, 72], strides = [1, 1]} : vector<36x72xf32> to vector<35x72xf32>
    %c1_106 = arith.constant 1 : index
    %c0_107 = arith.constant 0 : index
    %c0_108 = arith.constant 0 : index
    %261 = vector.load %arg8[%c1_106, %c0_107, %c0_108] : memref<2x36x72xf32, #tpu.memory_space<vmem>>, vector<1x35x72xf32>
    %262 = vector.shape_cast %261 : vector<1x35x72xf32> to vector<35x72xf32>
    %263 = vector.shape_cast %260 : vector<35x72xf32> to vector<1x35x72xf32>
    tpu.vector_store %arg8[%c1_106, %c0_107, %c0_108], %263 {strides = array<i32>} : memref<2x36x72xf32, #tpu.memory_space<vmem>>, vector<1x35x72xf32>,
    %cst_109 = arith.constant 0.000000e+00 : f32
    %264 = vector.broadcast %cst_109 : f32 to vector<1x72xf32>
    %c1_110 = arith.constant 1 : index
    %c35_111 = arith.constant 35 : index
    %c0_112 = arith.constant 0 : index
    %265 = vector.load %arg8[%c1_110, %c35_111, %c0_112] : memref<2x36x72xf32, #tpu.memory_space<vmem>>, vector<1x1x72xf32>
    %266 = vector.shape_cast %265 : vector<1x1x72xf32> to vector<1x72xf32>
    %267 = vector.shape_cast %264 : vector<1x72xf32> to vector<1x1x72xf32>
    tpu.vector_store %arg8[%c1_110, %c35_111, %c0_112], %267 {strides = array<i32>} : memref<2x36x72xf32, #tpu.memory_space<vmem>>, vector<1x1x72xf32>,
    %c1_113 = arith.constant 1 : index
    %c0_114 = arith.constant 0 : index
    %c0_115 = arith.constant 0 : index
    %268 = vector.load %arg8[%c1_113, %c0_114, %c0_115] : memref<2x36x72xf32, #tpu.memory_space<vmem>>, vector<1x36x72xf32>
    %269 = vector.shape_cast %268 : vector<1x36x72xf32> to vector<36x72xf32>
    %270 = arith.truncf %269 : vector<36x72xf32> to vector<36x72xbf16>
    %c2_116 = arith.constant 2 : index
    %c0_117 = arith.constant 0 : index
    %c0_118 = arith.constant 0 : index
    %271 = vector.load %arg4[%c2_116, %c0_117, %c0_118] : memref<3x72x64xbf16, #tpu.memory_space<vmem>>, vector<1x72x64xbf16>
    %272 = vector.shape_cast %271 : vector<1x72x64xbf16> to vector<72x64xbf16>
    %cst_119 = arith.constant dense<0.000000e+00> : vector<36x64xf32>
    %273 = tpu.matmul %270, %272, %cst_119 {dimension_numbers = #tpu.dot_dimension_numbers<[1], [0], [0], [1], [0, 0, 1, 1], [], []>} : vector<36x72xbf16>, vector<72x64xbf16>, vector<36x64xf32> -> vector<36x64xf32>
    %274 = arith.addf %259, %273 : vector<36x64xf32>
    %cst_120 = arith.constant 0.000000e+00 : f32
    %275 = vector.shape_cast %19 : vector<36x1xi1> to vector<36x1xi1>
    %276 = vector.broadcast %275 : vector<36x1xi1> to vector<36x64xi1>
    %277 = vector.broadcast %cst_120 : f32 to vector<36x64xf32>
    %278 = arith.select %276, %274, %277 : vector<36x64xi1>, vector<36x64xf32>
    %c0_121 = arith.constant 0 : index
    %c0_122 = arith.constant 0 : index
    %279 = vector.load %arg5[%c0_121, %c0_122] : memref<1x4xf32, #tpu.memory_space<vmem>>, vector<1x4xf32>
    %c0_123 = arith.constant 0 : index
    %c0_124 = arith.constant 0 : index
    %280 = vector.load %arg6[%c0_123, %c0_124] : memref<1x4xf32, #tpu.memory_space<vmem>>, vector<1x4xf32>
    %cst_125 = arith.constant dense<0.000000e+00> : vector<64xf32>
    %281 = vector.multi_reduction <add>, %278, %cst_125 [0] : vector<36x64xf32> to vector<64xf32>
    %282 = vector.shape_cast %281 : vector<64xf32> to vector<1x64xf32>
    %283 = arith.mulf %278, %278 : vector<36x64xf32>
    %cst_126 = arith.constant dense<0.000000e+00> : vector<64xf32>
    %284 = vector.multi_reduction <add>, %283, %cst_126 [0] : vector<36x64xf32> to vector<64xf32>
    %285 = vector.shape_cast %284 : vector<64xf32> to vector<1x64xf32>
    %286 = tpu.iota {dimensions = array<i32: 1>} : vector<1x64xi32>
    %c4_i32_127 = arith.constant 4 : i32
    %c0_i32_128 = arith.constant 0 : i32
    %287 = arith.cmpi eq, %c4_i32_127, %c0_i32_128 : i32
    %c1_i32_129 = arith.constant 1 : i32
    %288 = arith.select %287, %c1_i32_129, %c4_i32_127 : i32
    %289 = vector.broadcast %288 : i32 to vector<1x64xi32>
    %290 = arith.remsi %286, %289 : vector<1x64xi32>
    %c0_i32_130 = arith.constant 0 : i32
    %291 = vector.broadcast %c0_i32_130 : i32 to vector<1x64xi32>
    %292 = arith.cmpi ne, %290, %291 : vector<1x64xi32>
    %c0_i32_131 = arith.constant 0 : i32
    %293 = vector.broadcast %c0_i32_131 : i32 to vector<1x64xi32>
    %294 = arith.cmpi slt, %290, %293 : vector<1x64xi32>
    %c0_i32_132 = arith.constant 0 : i32
    %295 = arith.cmpi slt, %288, %c0_i32_132 : i32
    %296 = vector.broadcast %295 : i1 to vector<1x64xi1>
    %297 = vector.broadcast %296 : vector<1x64xi1> to vector<1x64xi1>
    %298 = arith.xori %294, %297 : vector<1x64xi1>
    %299 = arith.andi %298, %292 : vector<1x64xi1>
    %300 = vector.broadcast %288 : i32 to vector<1x64xi32>
    %301 = arith.addi %290, %300 : vector<1x64xi32>
    %302 = arith.select %299, %301, %290 : vector<1x64xi1>, vector<1x64xi32>
    %cst_133 = arith.constant 0.000000e+00 : f32
    %303 = vector.broadcast %cst_133 : f32 to vector<1x64xf32>
    %cst_134 = arith.constant 0.000000e+00 : f32
    %304 = vector.broadcast %cst_134 : f32 to vector<1x64xf32>
    %c0_i32_135 = arith.constant 0 : i32
    %305 = vector.broadcast %c0_i32_135 : i32 to vector<1x64xi32>
    %306 = arith.cmpi eq, %302, %305 : vector<1x64xi32>
    %cst_136 = arith.constant 0.000000e+00 : f32
    %307 = vector.broadcast %cst_136 : f32 to vector<1x64xf32>
    %308 = arith.select %306, %282, %307 : vector<1x64xi1>, vector<1x64xf32>
    %cst_137 = arith.constant dense<0.000000e+00> : vector<1xf32>
    %309 = vector.multi_reduction <add>, %308, %cst_137 [1] : vector<1x64xf32> to vector<1xf32>
    %310 = vector.shape_cast %309 : vector<1xf32> to vector<1x1xf32>
    %cst_138 = arith.constant 0.000000e+00 : f32
    %311 = vector.broadcast %cst_138 : f32 to vector<1x64xf32>
    %312 = arith.select %306, %285, %311 : vector<1x64xi1>, vector<1x64xf32>
    %cst_139 = arith.constant dense<0.000000e+00> : vector<1xf32>
    %313 = vector.multi_reduction <add>, %312, %cst_139 [1] : vector<1x64xf32> to vector<1xf32>
    %314 = vector.shape_cast %313 : vector<1xf32> to vector<1x1xf32>
    %cst_140 = arith.constant 0.001953125 : f32
    %315 = vector.broadcast %cst_140 : f32 to vector<1x1xf32>
    %316 = arith.mulf %310, %315 : vector<1x1xf32>
    %cst_141 = arith.constant 0.001953125 : f32
    %317 = vector.broadcast %cst_141 : f32 to vector<1x1xf32>
    %318 = arith.mulf %314, %317 : vector<1x1xf32>
    %319 = arith.mulf %316, %316 : vector<1x1xf32>
    %320 = arith.subf %318, %319 : vector<1x1xf32>
    %321 = vector.extract_strided_slice %279 {offsets = [0, 0], sizes = [1, 1], strides = [1, 1]} : vector<1x4xf32> to vector<1x1xf32>
    %cst_142 = arith.constant 9.99999974E-6 : f32
    %322 = vector.broadcast %cst_142 : f32 to vector<1x1xf32>
    %323 = arith.addf %320, %322 : vector<1x1xf32>
    %324 = math.rsqrt %323 : vector<1x1xf32>
    %325 = arith.mulf %321, %324 : vector<1x1xf32>
    %326 = vector.extract_strided_slice %280 {offsets = [0, 0], sizes = [1, 1], strides = [1, 1]} : vector<1x4xf32> to vector<1x1xf32>
    %327 = arith.mulf %316, %325 : vector<1x1xf32>
    %328 = arith.subf %326, %327 : vector<1x1xf32>
    %cst_143 = arith.constant 0.000000e+00 : f32
    %329 = vector.shape_cast %325 : vector<1x1xf32> to vector<1x1xf32>
    %330 = vector.broadcast %329 : vector<1x1xf32> to vector<1x64xf32>
    %331 = vector.broadcast %cst_143 : f32 to vector<1x64xf32>
    %332 = arith.select %306, %330, %331 : vector<1x64xi1>, vector<1x64xf32>
    %333 = arith.addf %303, %332 : vector<1x64xf32>
    %cst_144 = arith.constant 0.000000e+00 : f32
    %334 = vector.shape_cast %328 : vector<1x1xf32> to vector<1x1xf32>
    %335 = vector.broadcast %334 : vector<1x1xf32> to vector<1x64xf32>
    %336 = vector.broadcast %cst_144 : f32 to vector<1x64xf32>
    %337 = arith.select %306, %335, %336 : vector<1x64xi1>, vector<1x64xf32>
    %338 = arith.addf %304, %337 : vector<1x64xf32>
    %c1_i32_145 = arith.constant 1 : i32
    %339 = vector.broadcast %c1_i32_145 : i32 to vector<1x64xi32>
    %340 = arith.cmpi eq, %302, %339 : vector<1x64xi32>
    %cst_146 = arith.constant 0.000000e+00 : f32
    %341 = vector.broadcast %cst_146 : f32 to vector<1x64xf32>
    %342 = arith.select %340, %282, %341 : vector<1x64xi1>, vector<1x64xf32>
    %cst_147 = arith.constant dense<0.000000e+00> : vector<1xf32>
    %343 = vector.multi_reduction <add>, %342, %cst_147 [1] : vector<1x64xf32> to vector<1xf32>
    %344 = vector.shape_cast %343 : vector<1xf32> to vector<1x1xf32>
    %cst_148 = arith.constant 0.000000e+00 : f32
    %345 = vector.broadcast %cst_148 : f32 to vector<1x64xf32>
    %346 = arith.select %340, %285, %345 : vector<1x64xi1>, vector<1x64xf32>
    %cst_149 = arith.constant dense<0.000000e+00> : vector<1xf32>
    %347 = vector.multi_reduction <add>, %346, %cst_149 [1] : vector<1x64xf32> to vector<1xf32>
    %348 = vector.shape_cast %347 : vector<1xf32> to vector<1x1xf32>
    %cst_150 = arith.constant 0.001953125 : f32
    %349 = vector.broadcast %cst_150 : f32 to vector<1x1xf32>
    %350 = arith.mulf %344, %349 : vector<1x1xf32>
    %cst_151 = arith.constant 0.001953125 : f32
    %351 = vector.broadcast %cst_151 : f32 to vector<1x1xf32>
    %352 = arith.mulf %348, %351 : vector<1x1xf32>
    %353 = arith.mulf %350, %350 : vector<1x1xf32>
    %354 = arith.subf %352, %353 : vector<1x1xf32>
    %355 = vector.extract_strided_slice %279 {offsets = [0, 1], sizes = [1, 1], strides = [1, 1]} : vector<1x4xf32> to vector<1x1xf32>
    %cst_152 = arith.constant 9.99999974E-6 : f32
    %356 = vector.broadcast %cst_152 : f32 to vector<1x1xf32>
    %357 = arith.addf %354, %356 : vector<1x1xf32>
    %358 = math.rsqrt %357 : vector<1x1xf32>
    %359 = arith.mulf %355, %358 : vector<1x1xf32>
    %360 = vector.extract_strided_slice %280 {offsets = [0, 1], sizes = [1, 1], strides = [1, 1]} : vector<1x4xf32> to vector<1x1xf32>
    %361 = arith.mulf %350, %359 : vector<1x1xf32>
    %362 = arith.subf %360, %361 : vector<1x1xf32>
    %cst_153 = arith.constant 0.000000e+00 : f32
    %363 = vector.shape_cast %359 : vector<1x1xf32> to vector<1x1xf32>
    %364 = vector.broadcast %363 : vector<1x1xf32> to vector<1x64xf32>
    %365 = vector.broadcast %cst_153 : f32 to vector<1x64xf32>
    %366 = arith.select %340, %364, %365 : vector<1x64xi1>, vector<1x64xf32>
    %367 = arith.addf %333, %366 : vector<1x64xf32>
    %cst_154 = arith.constant 0.000000e+00 : f32
    %368 = vector.shape_cast %362 : vector<1x1xf32> to vector<1x1xf32>
    %369 = vector.broadcast %368 : vector<1x1xf32> to vector<1x64xf32>
    %370 = vector.broadcast %cst_154 : f32 to vector<1x64xf32>
    %371 = arith.select %340, %369, %370 : vector<1x64xi1>, vector<1x64xf32>
    %372 = arith.addf %338, %371 : vector<1x64xf32>
    %c2_i32_155 = arith.constant 2 : i32
    %373 = vector.broadcast %c2_i32_155 : i32 to vector<1x64xi32>
    %374 = arith.cmpi eq, %302, %373 : vector<1x64xi32>
    %cst_156 = arith.constant 0.000000e+00 : f32
    %375 = vector.broadcast %cst_156 : f32 to vector<1x64xf32>
    %376 = arith.select %374, %282, %375 : vector<1x64xi1>, vector<1x64xf32>
    %cst_157 = arith.constant dense<0.000000e+00> : vector<1xf32>
    %377 = vector.multi_reduction <add>, %376, %cst_157 [1] : vector<1x64xf32> to vector<1xf32>
    %378 = vector.shape_cast %377 : vector<1xf32> to vector<1x1xf32>
    %cst_158 = arith.constant 0.000000e+00 : f32
    %379 = vector.broadcast %cst_158 : f32 to vector<1x64xf32>
    %380 = arith.select %374, %285, %379 : vector<1x64xi1>, vector<1x64xf32>
    %cst_159 = arith.constant dense<0.000000e+00> : vector<1xf32>
    %381 = vector.multi_reduction <add>, %380, %cst_159 [1] : vector<1x64xf32> to vector<1xf32>
    %382 = vector.shape_cast %381 : vector<1xf32> to vector<1x1xf32>
    %cst_160 = arith.constant 0.001953125 : f32
    %383 = vector.broadcast %cst_160 : f32 to vector<1x1xf32>
    %384 = arith.mulf %378, %383 : vector<1x1xf32>
    %cst_161 = arith.constant 0.001953125 : f32
    %385 = vector.broadcast %cst_161 : f32 to vector<1x1xf32>
    %386 = arith.mulf %382, %385 : vector<1x1xf32>
    %387 = arith.mulf %384, %384 : vector<1x1xf32>
    %388 = arith.subf %386, %387 : vector<1x1xf32>
    %389 = vector.extract_strided_slice %279 {offsets = [0, 2], sizes = [1, 1], strides = [1, 1]} : vector<1x4xf32> to vector<1x1xf32>
    %cst_162 = arith.constant 9.99999974E-6 : f32
    %390 = vector.broadcast %cst_162 : f32 to vector<1x1xf32>
    %391 = arith.addf %388, %390 : vector<1x1xf32>
    %392 = math.rsqrt %391 : vector<1x1xf32>
    %393 = arith.mulf %389, %392 : vector<1x1xf32>
    %394 = vector.extract_strided_slice %280 {offsets = [0, 2], sizes = [1, 1], strides = [1, 1]} : vector<1x4xf32> to vector<1x1xf32>
    %395 = arith.mulf %384, %393 : vector<1x1xf32>
    %396 = arith.subf %394, %395 : vector<1x1xf32>
    %cst_163 = arith.constant 0.000000e+00 : f32
    %397 = vector.shape_cast %393 : vector<1x1xf32> to vector<1x1xf32>
    %398 = vector.broadcast %397 : vector<1x1xf32> to vector<1x64xf32>
    %399 = vector.broadcast %cst_163 : f32 to vector<1x64xf32>
    %400 = arith.select %374, %398, %399 : vector<1x64xi1>, vector<1x64xf32>
    %401 = arith.addf %367, %400 : vector<1x64xf32>
    %cst_164 = arith.constant 0.000000e+00 : f32
    %402 = vector.shape_cast %396 : vector<1x1xf32> to vector<1x1xf32>
    %403 = vector.broadcast %402 : vector<1x1xf32> to vector<1x64xf32>
    %404 = vector.broadcast %cst_164 : f32 to vector<1x64xf32>
    %405 = arith.select %374, %403, %404 : vector<1x64xi1>, vector<1x64xf32>
    %406 = arith.addf %372, %405 : vector<1x64xf32>
    %c3_i32_165 = arith.constant 3 : i32
    %407 = vector.broadcast %c3_i32_165 : i32 to vector<1x64xi32>
    %408 = arith.cmpi eq, %302, %407 : vector<1x64xi32>
    %cst_166 = arith.constant 0.000000e+00 : f32
    %409 = vector.broadcast %cst_166 : f32 to vector<1x64xf32>
    %410 = arith.select %408, %282, %409 : vector<1x64xi1>, vector<1x64xf32>
    %cst_167 = arith.constant dense<0.000000e+00> : vector<1xf32>
    %411 = vector.multi_reduction <add>, %410, %cst_167 [1] : vector<1x64xf32> to vector<1xf32>
    %412 = vector.shape_cast %411 : vector<1xf32> to vector<1x1xf32>
    %cst_168 = arith.constant 0.000000e+00 : f32
    %413 = vector.broadcast %cst_168 : f32 to vector<1x64xf32>
    %414 = arith.select %408, %285, %413 : vector<1x64xi1>, vector<1x64xf32>
    %cst_169 = arith.constant dense<0.000000e+00> : vector<1xf32>
    %415 = vector.multi_reduction <add>, %414, %cst_169 [1] : vector<1x64xf32> to vector<1xf32>
    %416 = vector.shape_cast %415 : vector<1xf32> to vector<1x1xf32>
    %cst_170 = arith.constant 0.001953125 : f32
    %417 = vector.broadcast %cst_170 : f32 to vector<1x1xf32>
    %418 = arith.mulf %412, %417 : vector<1x1xf32>
    %cst_171 = arith.constant 0.001953125 : f32
    %419 = vector.broadcast %cst_171 : f32 to vector<1x1xf32>
    %420 = arith.mulf %416, %419 : vector<1x1xf32>
    %421 = arith.mulf %418, %418 : vector<1x1xf32>
    %422 = arith.subf %420, %421 : vector<1x1xf32>
    %423 = vector.extract_strided_slice %279 {offsets = [0, 3], sizes = [1, 1], strides = [1, 1]} : vector<1x4xf32> to vector<1x1xf32>
    %cst_172 = arith.constant 9.99999974E-6 : f32
    %424 = vector.broadcast %cst_172 : f32 to vector<1x1xf32>
    %425 = arith.addf %422, %424 : vector<1x1xf32>
    %426 = math.rsqrt %425 : vector<1x1xf32>
    %427 = arith.mulf %423, %426 : vector<1x1xf32>
    %428 = vector.extract_strided_slice %280 {offsets = [0, 3], sizes = [1, 1], strides = [1, 1]} : vector<1x4xf32> to vector<1x1xf32>
    %429 = arith.mulf %418, %427 : vector<1x1xf32>
    %430 = arith.subf %428, %429 : vector<1x1xf32>
    %cst_173 = arith.constant 0.000000e+00 : f32
    %431 = vector.shape_cast %427 : vector<1x1xf32> to vector<1x1xf32>
    %432 = vector.broadcast %431 : vector<1x1xf32> to vector<1x64xf32>
    %433 = vector.broadcast %cst_173 : f32 to vector<1x64xf32>
    %434 = arith.select %408, %432, %433 : vector<1x64xi1>, vector<1x64xf32>
    %435 = arith.addf %401, %434 : vector<1x64xf32>
    %cst_174 = arith.constant 0.000000e+00 : f32
    %436 = vector.shape_cast %430 : vector<1x1xf32> to vector<1x1xf32>
    %437 = vector.broadcast %436 : vector<1x1xf32> to vector<1x64xf32>
    %438 = vector.broadcast %cst_174 : f32 to vector<1x64xf32>
    %439 = arith.select %408, %437, %438 : vector<1x64xi1>, vector<1x64xf32>
    %440 = arith.addf %406, %439 : vector<1x64xf32>
    %441 = vector.broadcast %435 : vector<1x64xf32> to vector<36x64xf32>
    %442 = arith.mulf %274, %441 : vector<36x64xf32>
    %443 = vector.broadcast %440 : vector<1x64xf32> to vector<36x64xf32>
    %444 = arith.addf %442, %443 : vector<36x64xf32>
    %445 = vector.extract_strided_slice %0 {offsets = [1, 4], sizes = [35, 64], strides = [1, 1]} : vector<36x72xf32> to vector<35x64xf32>
    %446 = vector.extract_strided_slice %444 {offsets = [0, 0], sizes = [35, 64], strides = [1, 1]} : vector<36x64xf32> to vector<35x64xf32>
    %447 = arith.addf %446, %445 : vector<35x64xf32>
    %cst_175 = arith.constant 0.000000e+00 : f32
    %448 = vector.broadcast %cst_175 : f32 to vector<35x64xf32>
    %449 = arith.maximumf %447, %448 : vector<35x64xf32>
    %c0_176 = arith.constant 0 : index
    %c0_177 = arith.constant 0 : index
    %450 = vector.load %arg7[%c0_176, %c0_177] : memref<36x64xf32, #tpu.memory_space<vmem>>, vector<35x64xf32>
    tpu.vector_store %arg7[%c0_176, %c0_177], %449 {strides = array<i32>} : memref<36x64xf32, #tpu.memory_space<vmem>>, vector<35x64xf32>,
    %cst_178 = arith.constant 0.000000e+00 : f32
    %451 = vector.broadcast %cst_178 : f32 to vector<1x64xf32>
    %c35_179 = arith.constant 35 : index
    %c0_180 = arith.constant 0 : index
    %452 = vector.load %arg7[%c35_179, %c0_180] : memref<36x64xf32, #tpu.memory_space<vmem>>, vector<1x64xf32>
    tpu.vector_store %arg7[%c35_179, %c0_180], %451 {strides = array<i32>} : memref<36x64xf32, #tpu.memory_space<vmem>>, vector<1x64xf32>,
    return
  }
}

</mosaic_0001>

<llo_original>
// kernel: tpu_custom_call.1
$region0: #{tpu_custom_call.1}
  #allocation0 [shape = 'u32[]', space=smem, size = 0x4, offset = 0x4, fixed_abs, tag = 'smem constant byte address 0x4 - core index']
  #allocation1 [shape = 'u32[144,128]{1,0:T(1,128)}', space=vmem, size = 0x12000, scoped, tag = 'internal scratch']
  #allocation2 [shape = 'f32[2,36,72]{2,1,0:T(8,128)}', space=vmem, size = 0xa000, scoped, tag = 'scratch operand']
  %s0 = inlined_call_operand.vmem [shape: f32[36,72], index: 0, kind: input, shape index: {}]
  %s1 = inlined_call_operand.vmem [shape: bf16[3,72,72], index: 1, kind: input, shape index: {}]
  %s2 = inlined_call_operand.vmem [shape: f32[1,4], index: 2, kind: input, shape index: {}]
  %s3 = inlined_call_operand.vmem [shape: f32[1,4], index: 3, kind: input, shape index: {}]
  %s4 = inlined_call_operand.vmem [shape: bf16[3,72,64], index: 4, kind: input, shape index: {}]
  %s5 = inlined_call_operand.vmem [shape: f32[1,4], index: 5, kind: input, shape index: {}]
  %s6 = inlined_call_operand.vmem [shape: f32[1,4], index: 6, kind: input, shape index: {}]
  %s7 = inlined_call_operand.hbm [shape: f32[36,64], index: 7, kind: output, shape index: {}]
  %s8 = sld [smem:[#allocation0]]
  $region38: #{tpu_custom_call.1} parent=0
    _
  %s10 = ssub.s32 1, %s8
  %s11 = scalar_select 0, %s10, %s8
  $region1: #{tpu_custom_call.1} parent=0
    #allocation3 [shape = 'u8[20480]{0}', space=vmem, size = 0x5000, scoped, tag = 'output window, operand 0, single buffered']
    #allocation4 [shape = 's32[1]{0}', space=sflag, size = 0x4, scoped, tag = 'scoped memory for tpu_custom_call.1']
    %12 = vsyncpa [#allocation4], 0
    // Predicated region
    $region2: #{tpu_custom_call.1} parent=1 // pred_check
      _
    $region3: #{tpu_custom_call.1} parent=1 // pred_check_branch
      %14 = sbr.rel (0) target = $region5
    $region4: #{tpu_custom_call.1} parent=1 // pred_region
      _
    $region5: #{tpu_custom_call.1} parent=1 // pred_fallthru
      _
    // Predicated region
    $region6: #{tpu_custom_call.1} parent=1 // pred_check
      _
    $region7: #{tpu_custom_call.1} parent=1 // pred_check_branch
      %16 = sbr.rel (0) target = $region9
    $region8: #{tpu_custom_call.1} parent=1 // pred_region
      _
    $region9: #{tpu_custom_call.1} parent=1 // pred_fallthru
      _
    // Predicated region
    $region10: #{tpu_custom_call.1} parent=1 // pred_check
      _
    $region11: #{tpu_custom_call.1} parent=1 // pred_check_branch
      %18 = sbr.rel (0) target = $region13
    $region12: #{tpu_custom_call.1} parent=1 // pred_region
      _
    $region13: #{tpu_custom_call.1} parent=1 // pred_fallthru
      _
    // Predicated region
    $region14: #{tpu_custom_call.1} parent=1 // pred_check
      _
    $region15: #{tpu_custom_call.1} parent=1 // pred_check_branch
      %20 = sbr.rel (0) target = $region17
    $region16: #{tpu_custom_call.1} parent=1 // pred_region
      _
    $region17: #{tpu_custom_call.1} parent=1 // pred_fallthru
      _
    // Predicated region
    $region18: #{tpu_custom_call.1} parent=1 // pred_check
      _
    $region19: #{tpu_custom_call.1} parent=1 // pred_check_branch
      %22 = sbr.rel (0) target = $region21
    $region20: #{tpu_custom_call.1} parent=1 // pred_region
      _
    $region21: #{tpu_custom_call.1} parent=1 // pred_fallthru
      _
    // Predicated region
    $region22: #{tpu_custom_call.1} parent=1 // pred_check
      _
    $region23: #{tpu_custom_call.1} parent=1 // pred_check_branch
      %24 = sbr.rel (0) target = $region25
    $region24: #{tpu_custom_call.1} parent=1 // pred_region
      _
    $region25: #{tpu_custom_call.1} parent=1 // pred_fallthru
      _
    // Predicated region
    $region26: #{tpu_custom_call.1} parent=1 // pred_check
      _
    $region27: #{tpu_custom_call.1} parent=1 // pred_check_branch
      %26 = sbr.rel (0) target = $region29
    $region28: #{tpu_custom_call.1} parent=1 // pred_region
      _
    $region29: #{tpu_custom_call.1} parent=1 // pred_fallthru
      _
    %v28 = vld [vmem:[%s0] sm:$0xff]
    %v29 = vld [vmem:[%s0 + $0x8] sm:$0xff]
    %v30 = vld [vmem:[%s0 + $0x10] sm:$0xff]
    %v31 = vld [vmem:[%s0 + $0x18] sm:$0xff]
    %v32 = vld [vmem:[%s0 + $0x20] sm:$0xf]
    %v33 = vlaneseq
    %v34 = vshrl.u32 %v33, 7
    %v35 = vadd.s32 %v34, 8
    %v36 = vadd.s32 %v34, 16
    %v37 = vadd.s32 %v34, 24
    %v38 = vadd.s32 %v34, 32
    %vm39 = vcmp.lt.s32.totalorder %v34, 0
    %v40 = vsub.s32 0, %v34
    %v41 = vsel %vm39, %v40, %v34
    %v42 = vmul.u32.u64.compose %v41, 3817748708
    %v43 = vextract.low.u32 %v42
    %v44 = vextract.high.u32 %v42
    %v45 = vshrl.u32 %v44, 4
    %v46 = vmul.u32 %v45, 18
    %v47 = vsub.s32 %v41, %v46
    %v48 = vsub.s32 0, %v47
    %v49 = vsel %vm39, %v48, %v47
    %vm50 = vcmp.lt.s32.totalorder %v35, 0
    %v51 = vsub.s32 0, %v35
    %v52 = vsel %vm50, %v51, %v35
    %v53 = vmul.u32.u64.compose %v52, 3817748708
    %v54 = vextract.low.u32 %v53
    %v55 = vextract.high.u32 %v53
    %v56 = vshrl.u32 %v55, 4
    %v57 = vmul.u32 %v56, 18
    %v58 = vsub.s32 %v52, %v57
    %v59 = vsub.s32 0, %v58
    %v60 = vsel %vm50, %v59, %v58
    %vm61 = vcmp.lt.s32.totalorder %v36, 0
    %v62 = vsub.s32 0, %v36
    %v63 = vsel %vm61, %v62, %v36
    %v64 = vmul.u32.u64.compose %v63, 3817748708
    %v65 = vextract.low.u32 %v64
    %v66 = vextract.high.u32 %v64
    %v67 = vshrl.u32 %v66, 4
    %v68 = vmul.u32 %v67, 18
    %v69 = vsub.s32 %v63, %v68
    %v70 = vsub.s32 0, %v69
    %v71 = vsel %vm61, %v70, %v69
    %vm72 = vcmp.lt.s32.totalorder %v37, 0
    %v73 = vsub.s32 0, %v37
    %v74 = vsel %vm72, %v73, %v37
    %v75 = vmul.u32.u64.compose %v74, 3817748708
    %v76 = vextract.low.u32 %v75
    %v77 = vextract.high.u32 %v75
    %v78 = vshrl.u32 %v77, 4
    %v79 = vmul.u32 %v78, 18
    %v80 = vsub.s32 %v74, %v79
    %v81 = vsub.s32 0, %v80
    %v82 = vsel %vm72, %v81, %v80
    %vm83 = vcmp.lt.s32.totalorder %v38, 0
    %v84 = vsub.s32 0, %v38
    %v85 = vsel %vm83, %v84, %v38
    %v86 = vmul.u32.u64.compose %v85, 3817748708
    %v87 = vextract.low.u32 %v86
    %v88 = vextract.high.u32 %v86
    %v89 = vshrl.u32 %v88, 4
    %v90 = vmul.u32 %v89, 18
    %v91 = vsub.s32 %v85, %v90
    %v92 = vsub.s32 0, %v91
    %v93 = vsel %vm83, %v92, %v91
    %vm94 = vcmp.ne.s32.totalorder %v49, 0
    %vm95 = vcmp.ne.s32.totalorder %v60, 0
    %vm96 = vcmp.ne.s32.totalorder %v71, 0
    %vm97 = vcmp.ne.s32.totalorder %v82, 0
    %vm98 = vcmp.ne.s32.totalorder %v93, 0
    %vm99 = vcmp.lt.s32.totalorder %v49, 0
    %vm100 = vcmp.lt.s32.totalorder %v60, 0
    %vm101 = vcmp.lt.s32.totalorder %v71, 0
    %vm102 = vcmp.lt.s32.totalorder %v82, 0
    %vm103 = vcmp.lt.s32.totalorder %v93, 0
    %vm104 = vmand %vm99, %vm94
    %vm105 = vmand %vm100, %vm95
    %vm106 = vmand %vm101, %vm96
    %vm107 = vmand %vm102, %vm97
    %vm108 = vmand %vm103, %vm98
    %v109 = vadd.s32 %v49, 18
    %v110 = vadd.s32 %v60, 18
    %v111 = vadd.s32 %v71, 18
    %v112 = vadd.s32 %v82, 18
    %v113 = vadd.s32 %v93, 18
    %v114 = vsel %vm104, %v109, %v49
    %v115 = vsel %vm105, %v110, %v60
    %v116 = vsel %vm106, %v111, %v71
    %v117 = vsel %vm107, %v112, %v82
    %v118 = vsel %vm108, %v113, %v93
    %vm119 = vcmp.lt.s32.totalorder %v114, 16
    %vm120 = vcmp.lt.s32.totalorder %v115, 16
    %vm121 = vcmp.lt.s32.totalorder %v116, 16
    %vm122 = vcmp.lt.s32.totalorder %v117, 16
    %vm123 = vcmp.lt.s32.totalorder %v118, 16
    %v124 = vlaneseq
    %v125 = vand.u32 %v124, 127
    %vm126 = vcmp.ge.s32.totalorder %v125, 4
    %vm127 = vcmp.lt.s32.totalorder %v125, 68
    %vm128 = vmand %vm126, %vm127
    %v129 = vpack.c.bf16 %v29, %v28
    %v130 = vpack.c.bf16 %v31, %v30
    %v131 = vpack.c.bf16 %v32, %v32
    %v132 = vld [vmem:[%s1] sm:$0xf]
    %v133 = vld [vmem:[%s1 + $0x4] sm:$0xf]
    %v134 = vld [vmem:[%s1 + $0x8] sm:$0xf]
    %v135 = vld [vmem:[%s1 + $0xc] sm:$0xf]
    %v136 = vld [vmem:[%s1 + $0x10] sm:$0xf]
    %v137 = vld [vmem:[%s1 + $0x14] sm:$0xf]
    %v138 = vld [vmem:[%s1 + $0x18] sm:$0xf]
    %v139 = vld [vmem:[%s1 + $0x1c] sm:$0xf]
    %v140 = vld [vmem:[%s1 + $0x20] sm:$0xf]
    %vm141 = vcmask 588801
    %142 = vst.msk [vmem:[#allocation2 - $0x1] sm:$0xfe] %vm141, %v28
    %vm143 = vcmask 588800
    %144 = vst.msk [vmem:[#allocation2 + $0x7] sm:$0xff] %vm143, %v29
    %145 = vst.msk [vmem:[#allocation2 + $0xf] sm:$0xff] %vm143, %v30
    %146 = vst.msk [vmem:[#allocation2 + $0x17] sm:$0xff] %vm143, %v31
    %vm147 = vcmask 584704
    %148 = vst.msk [vmem:[#allocation2 + $0x1f] sm:$0xf] %vm147, %v32
    %vm149 = vcmask 581632
    %150 = vst.msk [vmem:[#allocation2 + $0x23] sm:$0x1] %vm149, 0.0
    %v151 = vld [vmem:[#allocation2] sm:$0xff]
    %v152 = vld [vmem:[#allocation2 + $0x8] sm:$0xff]
    %v153 = vld [vmem:[#allocation2 + $0x10] sm:$0xff]
    %v154 = vld [vmem:[#allocation2 + $0x18] sm:$0xff]
    %v155 = vld [vmem:[#allocation2 + $0x20] sm:$0xf]
    %v156 = vpack.c.bf16 %v152, %v151
    %v157 = vpack.c.bf16 %v154, %v153
    %v158 = vpack.c.bf16 %v155, %v155
    %s159 = scalar_lea.vmem %s1, 36
    %v160 = vld [vmem:[%s159] sm:$0xf]
    %v161 = vld [vmem:[%s159 + $0x4] sm:$0xf]
    %v162 = vld [vmem:[%s159 + $0x8] sm:$0xf]
    %v163 = vld [vmem:[%s159 + $0xc] sm:$0xf]
    %v164 = vld [vmem:[%s159 + $0x10] sm:$0xf]
    %v165 = vld [vmem:[%s159 + $0x14] sm:$0xf]
    %v166 = vld [vmem:[%s159 + $0x18] sm:$0xf]
    %v167 = vld [vmem:[%s159 + $0x1c] sm:$0xf]
    %v168 = vld [vmem:[%s159 + $0x20] sm:$0xf]
    %v178 = vunpack.c.l.b16 %v160
    %v179 = vunpack.c.l.b16 %v161
    %v180 = vunpack.c.l.b16 %v162
    %v181 = vunpack.c.l.b16 %v163
    %v182 = vunpack.c.l.b16 %v164
    %v183 = vunpack.c.l.b16 %v165
    %v184 = vunpack.c.l.b16 %v166
    %v185 = vunpack.c.l.b16 %v167
    %v186 = vunpack.c.l.b16 %v168
    %v187 = vpack.c.b16 %v179, %v178
    %v188 = vpack.c.b16 %v181, %v180
    %v189 = vpack.c.b16 %v183, %v182
    %v190 = vpack.c.b16 %v185, %v184
    %v191 = vpack.c.b16 %v186, %v186
    %v197 = vsel %vm143, %v156, 0
    %v200 = vsel %vm143, %v157, 0
    %v203 = vsel %vm143, %v158, 0
    %vm205 = vcmask 1043456
    %v207 = vsel %vm205, %v191, 0
    %209 = vmatprep.subr.bf16.mxu0 0
    %210 = vmatpush1.bf16.msra.mxu0 0
    %211 = vmatprep.subr.bf16.mxu0 0
    %212 = vmatpush1.bf16.msra.mxu0 0
    %213 = vmatprep.subr.bf16.mxu0 0
    %214 = vmatpush1.bf16.msra.mxu0 0
    %215 = vmatprep.subr.bf16.mxu0 0
    %216 = vmatpush1.bf16.msra.mxu0 %v207
    %217 = vmatprep.subr.bf16.mxu0 0
    %218 = vmatpush1.bf16.msra.mxu0 %v190
    %219 = vmatprep.subr.bf16.mxu0 0
    %220 = vmatpush1.bf16.msra.mxu0 %v189
    %221 = vmatprep.subr.bf16.mxu0 0
    %222 = vmatpush1.bf16.msra.mxu0 %v188
    %223 = vmatprep.subr.bf16.mxu0 0
    %224 = vmatpush1.bf16.msra.mxu0 %v187
    %225 = vmatprep.subr.bf16.mxu0 0
    %226 = vmatpush2.bf16.msra.mxu0 0
    %227 = vmatprep.subr.bf16.mxu0 0
    %228 = vmatpush2.bf16.msra.mxu0 0
    %229 = vmatprep.subr.bf16.mxu0 0
    %230 = vmatpush2.bf16.msra.mxu0 0
    %231 = vmatprep.subr.bf16.mxu0 0
    %232 = vmatpush2.bf16.msra.mxu0 0
    %233 = vmatprep.subr.bf16.mxu0 0
    %234 = vmatpush2.bf16.msra.mxu0 0
    %235 = vmatprep.subr.bf16.mxu0 0
    %236 = vmatpush2.bf16.msra.mxu0 0
    %237 = vmatprep.subr.bf16.mxu0 0
    %238 = vmatpush2.bf16.msra.mxu0 0
    %239 = vmatprep.subr.bf16.mxu0 0
    %240 = vmatpush2.bf16.msra.mxu0 0
    %241 = vmatprep.mubr.bf16.mxu0 0
    %242 = vmatmul.mubr.bf16.gmra.mxu0 %v197
    %v243 = vpop.f32.mrf.mxu0
    %v244 = vadd.f32 0.0, %v243
    %v245 = vpop.f32.mrf.mxu0
    %v246 = vpop.f32.mrf.mxu0
    %v247 = vadd.f32 0.0, %v246
    %v248 = vpop.f32.mrf.mxu0
    %249 = vmatprep.mubr.bf16.mxu0 0
    %250 = vmatmul.mubr.bf16.gmra.mxu0 %v200
    %v251 = vpop.f32.mrf.mxu0
    %v252 = vadd.f32 0.0, %v251
    %v253 = vpop.f32.mrf.mxu0
    %v254 = vpop.f32.mrf.mxu0
    %v255 = vadd.f32 0.0, %v254
    %v256 = vpop.f32.mrf.mxu0
    %257 = vmatprep.mubr.bf16.mxu0 0
    %258 = vmatmul.mubr.bf16.gmra.mxu0 %v203
    %v259 = vpop.f32.mrf.mxu0
    %v260 = vadd.f32 0.0, %v259
    %v261 = vpop.f32.mrf.mxu0
    %v262 = vpop.f32.mrf.mxu0
    %v263 = vpop.f32.mrf.mxu0
    %264 = vdwg.mxu0
    %v274 = vunpack.c.l.b16 %v132
    %v275 = vunpack.c.l.b16 %v133
    %v276 = vunpack.c.l.b16 %v134
    %v277 = vunpack.c.l.b16 %v135
    %v278 = vunpack.c.l.b16 %v136
    %v279 = vunpack.c.l.b16 %v137
    %v280 = vunpack.c.l.b16 %v138
    %v281 = vunpack.c.l.b16 %v139
    %v282 = vunpack.c.l.b16 %v140
    %v283 = vpack.c.b16 %v275, %v274
    %v284 = vpack.c.b16 %v277, %v276
    %v285 = vpack.c.b16 %v279, %v278
    %v286 = vpack.c.b16 %v281, %v280
    %v287 = vpack.c.b16 %v282, %v282
    %v293 = vsel %vm143, %v129, 0
    %v296 = vsel %vm143, %v130, 0
    %v299 = vsel %vm143, %v131, 0
    %v302 = vsel %vm205, %v287, 0
    %304 = vmatprep.subr.bf16.mxu0 0
    %305 = vmatpush1.bf16.msra.mxu0 0
    %306 = vmatprep.subr.bf16.mxu0 0
    %307 = vmatpush1.bf16.msra.mxu0 0
    %308 = vmatprep.subr.bf16.mxu0 0
    %309 = vmatpush1.bf16.msra.mxu0 0
    %310 = vmatprep.subr.bf16.mxu0 0
    %311 = vmatpush1.bf16.msra.mxu0 %v302
    %312 = vmatprep.subr.bf16.mxu0 0
    %313 = vmatpush1.bf16.msra.mxu0 %v286
    %314 = vmatprep.subr.bf16.mxu0 0
    %315 = vmatpush1.bf16.msra.mxu0 %v285
    %316 = vmatprep.subr.bf16.mxu0 0
    %317 = vmatpush1.bf16.msra.mxu0 %v284
    %318 = vmatprep.subr.bf16.mxu0 0
    %319 = vmatpush1.bf16.msra.mxu0 %v283
    %320 = vmatprep.subr.bf16.mxu0 0
    %321 = vmatpush2.bf16.msra.mxu0 0
    %322 = vmatprep.subr.bf16.mxu0 0
    %323 = vmatpush2.bf16.msra.mxu0 0
    %324 = vmatprep.subr.bf16.mxu0 0
    %325 = vmatpush2.bf16.msra.mxu0 0
    %326 = vmatprep.subr.bf16.mxu0 0
    %327 = vmatpush2.bf16.msra.mxu0 0
    %328 = vmatprep.subr.bf16.mxu0 0
    %329 = vmatpush2.bf16.msra.mxu0 0
    %330 = vmatprep.subr.bf16.mxu0 0
    %331 = vmatpush2.bf16.msra.mxu0 0
    %332 = vmatprep.subr.bf16.mxu0 0
    %333 = vmatpush2.bf16.msra.mxu0 0
    %334 = vmatprep.subr.bf16.mxu0 0
    %335 = vmatpush2.bf16.msra.mxu0 0
    %336 = vmatprep.mubr.bf16.mxu0 0
    %337 = vmatmul.mubr.bf16.gmra.mxu0 %v293
    %v338 = vpop.f32.mrf.mxu0
    %v339 = vadd.f32 %v244, %v338
    %v340 = vpop.f32.mrf.mxu0
    %v341 = vpop.f32.mrf.mxu0
    %v342 = vadd.f32 %v247, %v341
    %v343 = vpop.f32.mrf.mxu0
    %344 = vmatprep.mubr.bf16.mxu0 0
    %345 = vmatmul.mubr.bf16.gmra.mxu0 %v296
    %v346 = vpop.f32.mrf.mxu0
    %v347 = vadd.f32 %v252, %v346
    %v348 = vpop.f32.mrf.mxu0
    %v349 = vpop.f32.mrf.mxu0
    %v350 = vadd.f32 %v255, %v349
    %v351 = vpop.f32.mrf.mxu0
    %352 = vmatprep.mubr.bf16.mxu0 0
    %353 = vmatmul.mubr.bf16.gmra.mxu0 %v299
    %v354 = vpop.f32.mrf.mxu0
    %v355 = vadd.f32 %v260, %v354
    %v356 = vpop.f32.mrf.mxu0
    %v357 = vpop.f32.mrf.mxu0
    %v358 = vpop.f32.mrf.mxu0
    %359 = vdwg.mxu0
    %s360 = scalar_lea.vmem [#allocation2], 40
    %vm361 = vcmask 588802
    %362 = vst.msk [vmem:[%s360 - $0x2] sm:$0xfc] %vm361, %v28
    %363 = vst.msk [vmem:[%s360 + $0x6] sm:$0xff] %vm143, %v29
    %364 = vst.msk [vmem:[%s360 + $0xe] sm:$0xff] %vm143, %v30
    %365 = vst.msk [vmem:[%s360 + $0x16] sm:$0xff] %vm143, %v31
    %366 = vst.msk [vmem:[%s360 + $0x1e] sm:$0xf] %vm147, %v32
    %vm367 = vcmask 582656
    %368 = vst.msk [vmem:[%s360 + $0x22] sm:$0x3] %vm367, 0.0
    %v369 = vld [vmem:[%s360] sm:$0xff]
    %v370 = vld [vmem:[%s360 + $0x8] sm:$0xff]
    %v371 = vld [vmem:[%s360 + $0x10] sm:$0xff]
    %v372 = vld [vmem:[%s360 + $0x18] sm:$0xff]
    %v373 = vld [vmem:[%s360 + $0x20] sm:$0xf]
    %v374 = vpack.c.bf16 %v370, %v369
    %v375 = vpack.c.bf16 %v372, %v371
    %v376 = vpack.c.bf16 %v373, %v373
    %s377 = scalar_lea.vmem %s1, 72
    %v378 = vld [vmem:[%s377] sm:$0xf]
    %v379 = vld [vmem:[%s377 + $0x4] sm:$0xf]
    %v380 = vld [vmem:[%s377 + $0x8] sm:$0xf]
    %v381 = vld [vmem:[%s377 + $0xc] sm:$0xf]
    %v382 = vld [vmem:[%s377 + $0x10] sm:$0xf]
    %v383 = vld [vmem:[%s377 + $0x14] sm:$0xf]
    %v384 = vld [vmem:[%s377 + $0x18] sm:$0xf]
    %v385 = vld [vmem:[%s377 + $0x1c] sm:$0xf]
    %v386 = vld [vmem:[%s377 + $0x20] sm:$0xf]
    %v396 = vunpack.c.l.b16 %v378
    %v397 = vunpack.c.l.b16 %v379
    %v398 = vunpack.c.l.b16 %v380
    %v399 = vunpack.c.l.b16 %v381
    %v400 = vunpack.c.l.b16 %v382
    %v401 = vunpack.c.l.b16 %v383
    %v402 = vunpack.c.l.b16 %v384
    %v403 = vunpack.c.l.b16 %v385
    %v404 = vunpack.c.l.b16 %v386
    %v405 = vpack.c.b16 %v397, %v396
    %v406 = vpack.c.b16 %v399, %v398
    %v407 = vpack.c.b16 %v401, %v400
    %v408 = vpack.c.b16 %v403, %v402
    %v409 = vpack.c.b16 %v404, %v404
    %v415 = vsel %vm143, %v374, 0
    %v418 = vsel %vm143, %v375, 0
    %v421 = vsel %vm143, %v376, 0
    %v424 = vsel %vm205, %v409, 0
    %426 = vmatprep.subr.bf16.mxu0 0
    %427 = vmatpush1.bf16.msra.mxu0 0
    %428 = vmatprep.subr.bf16.mxu0 0
    %429 = vmatpush1.bf16.msra.mxu0 0
    %430 = vmatprep.subr.bf16.mxu0 0
    %431 = vmatpush1.bf16.msra.mxu0 0
    %432 = vmatprep.subr.bf16.mxu0 0
    %433 = vmatpush1.bf16.msra.mxu0 %v424
    %434 = vmatprep.subr.bf16.mxu0 0
    %435 = vmatpush1.bf16.msra.mxu0 %v408
    %436 = vmatprep.subr.bf16.mxu0 0
    %437 = vmatpush1.bf16.msra.mxu0 %v407
    %438 = vmatprep.subr.bf16.mxu0 0
    %439 = vmatpush1.bf16.msra.mxu0 %v406
    %440 = vmatprep.subr.bf16.mxu0 0
    %441 = vmatpush1.bf16.msra.mxu0 %v405
    %442 = vmatprep.subr.bf16.mxu0 0
    %443 = vmatpush2.bf16.msra.mxu0 0
    %444 = vmatprep.subr.bf16.mxu0 0
    %445 = vmatpush2.bf16.msra.mxu0 0
    %446 = vmatprep.subr.bf16.mxu0 0
    %447 = vmatpush2.bf16.msra.mxu0 0
    %448 = vmatprep.subr.bf16.mxu0 0
    %449 = vmatpush2.bf16.msra.mxu0 0
    %450 = vmatprep.subr.bf16.mxu0 0
    %451 = vmatpush2.bf16.msra.mxu0 0
    %452 = vmatprep.subr.bf16.mxu0 0
    %453 = vmatpush2.bf16.msra.mxu0 0
    %454 = vmatprep.subr.bf16.mxu0 0
    %455 = vmatpush2.bf16.msra.mxu0 0
    %456 = vmatprep.subr.bf16.mxu0 0
    %457 = vmatpush2.bf16.msra.mxu0 0
    %458 = vmatprep.mubr.bf16.mxu0 0
    %459 = vmatmul.mubr.bf16.gmra.mxu0 %v415
    %v460 = vpop.f32.mrf.mxu0
    %v461 = vadd.f32 0.0, %v460
    %v462 = vpop.f32.mrf.mxu0
    %v463 = vpop.f32.mrf.mxu0
    %v464 = vadd.f32 0.0, %v463
    %v465 = vpop.f32.mrf.mxu0
    %466 = vmatprep.mubr.bf16.mxu0 0
    %467 = vmatmul.mubr.bf16.gmra.mxu0 %v418
    %v468 = vpop.f32.mrf.mxu0
    %v469 = vadd.f32 0.0, %v468
    %v470 = vpop.f32.mrf.mxu0
    %v471 = vpop.f32.mrf.mxu0
    %v472 = vadd.f32 0.0, %v471
    %v473 = vpop.f32.mrf.mxu0
    %474 = vmatprep.mubr.bf16.mxu0 0
    %475 = vmatmul.mubr.bf16.gmra.mxu0 %v421
    %v476 = vpop.f32.mrf.mxu0
    %v477 = vadd.f32 0.0, %v476
    %v478 = vpop.f32.mrf.mxu0
    %v479 = vpop.f32.mrf.mxu0
    %v480 = vpop.f32.mrf.mxu0
    %481 = vdwg.mxu0
    %v482 = vadd.f32 %v339, %v461
    %v483 = vadd.f32 %v342, %v464
    %v484 = vadd.f32 %v347, %v469
    %v485 = vadd.f32 %v350, %v472
    %v486 = vadd.f32 %v355, %v477
    %v487 = vsel %vm119, 1, 0
    %v488 = vsel %vm120, 1, 0
    %v489 = vsel %vm121, 1, 0
    %v490 = vsel %vm122, 1, 0
    %v491 = vsel %vm123, 1, 0
    %vm492 = vcmp.eq.s32.totalorder %v487, 1
    %vm493 = vcmp.eq.s32.totalorder %v488, 1
    %vm494 = vcmp.eq.s32.totalorder %v489, 1
    %vm495 = vcmp.eq.s32.totalorder %v490, 1
    %vm496 = vcmp.eq.s32.totalorder %v491, 1
    %v497 = vsel %vm492, %v482, 0.0
    %v498 = vsel %vm493, %v483, 0.0
    %v499 = vsel %vm494, %v484, 0.0
    %v500 = vsel %vm495, %v485, 0.0
    %v501 = vsel %vm496, %v486, 0.0
    %v502 = vld [vmem:[%s2] sm:$0x1]
    %v503 = vld [vmem:[%s3] sm:$0x1]
    %v504 = vsel %vm143, %v497, 0.0
    %v505 = vsel %vm143, %v498, 0.0
    %v506 = vadd.f32 %v504, %v505
    %v507 = vsel %vm143, %v499, 0.0
    %v508 = vadd.f32 %v506, %v507
    %v509 = vsel %vm143, %v500, 0.0
    %v510 = vadd.f32 %v508, %v509
    %v511 = vsel %vm147, %v501, 0.0
    %v512 = vadd.f32 %v510, %v511
    %v513 = vrot.slane %v512, 4
    %v514 = vadd.f32 %v512, %v513
    %v515 = vrot.slane %v514, 2
    %v516 = vadd.f32 %v514, %v515
    %v517 = vrot.slane %v516, 1
    %v518 = vadd.f32 %v516, %v517
    %v519 = vmul.f32 %v497, %v497
    %v520 = vmul.f32 %v498, %v498
    %v521 = vmul.f32 %v499, %v499
    %v522 = vmul.f32 %v500, %v500
    %v523 = vmul.f32 %v501, %v501
    %v524 = vsel %vm143, %v519, 0.0
    %v525 = vsel %vm143, %v520, 0.0
    %v526 = vadd.f32 %v524, %v525
    %v527 = vsel %vm143, %v521, 0.0
    %v528 = vadd.f32 %v526, %v527
    %v529 = vsel %vm143, %v522, 0.0
    %v530 = vadd.f32 %v528, %v529
    %v531 = vsel %vm147, %v523, 0.0
    %v532 = vadd.f32 %v530, %v531
    %v533 = vrot.slane %v532, 4
    %v534 = vadd.f32 %v532, %v533
    %v535 = vrot.slane %v534, 2
    %v536 = vadd.f32 %v534, %v535
    %v537 = vrot.slane %v536, 1
    %v538 = vadd.f32 %v536, %v537
    %vm539 = vcmp.lt.s32.totalorder %v125, 0
    %v540 = vsub.s32 0, %v125
    %v541 = vsel %vm539, %v540, %v125
    %v542 = vshrl.u32 %v541, 2
    %v543 = vand.u32 %v541, 3
    %v544 = vsub.s32 0, %v543
    %v545 = vsel %vm539, %v544, %v543
    %vm546 = vcmp.ne.s32.totalorder %v545, 0
    %vm547 = vcmp.lt.s32.totalorder %v545, 0
    %vm548 = vmand %vm547, %vm546
    %v549 = vadd.s32 %v545, 4
    %v550 = vsel %vm548, %v549, %v545
    %vm551 = vcmp.eq.s32.totalorder %v550, 0
    %v552 = vsel %vm551, %v518, 0.0
    %v553 = vsel %vm143, %v552, 0.0
    %554 = vadd.xlane.f32.xlu0 %v553
    %v555 = vpop.xlane.xlu0 %554
    %v556 = vsel %vm551, %v538, 0.0
    %v557 = vsel %vm143, %v556, 0.0
    %558 = vadd.xlane.f32.xlu0 %v557
    %v559 = vpop.xlane.xlu0 %558
    %v560 = vmul.f32 %v555, 0.001953125
    %v561 = vmul.f32 %v559, 0.001953125
    %v562 = vmul.f32 %v560, %v560
    %v563 = vsub.f32 %v561, %v562
    %v564 = vadd.f32 %v563, 1e-05
    %v565 = vrsqrt.pop %v564
    %v566 = vmul.f32 %v502, %v565
    %v567 = vmul.f32 %v560, %v566
    %v568 = vsub.f32 %v503, %v567
    %570 = vset.pattern.permute.xlu0 0
    %571 = vperm.xlu0 %570, %v566
    %v572 = vpop.permute.xlu0 %571
    %v574 = vlaneseq
    %v575 = vshrl.u32 %v574, 7
    %v576 = vsub.s32 0, %v575
    %v577 = vrot.slane %v572, %v576
    %v578 = vsel %vm551, %v577, 0.0
    %v579 = vadd.f32 %v578, 0.0
    %581 = vset.pattern.permute.xlu0 0
    %582 = vperm.xlu0 %581, %v568
    %v583 = vpop.permute.xlu0 %582
    %v585 = vlaneseq
    %v586 = vshrl.u32 %v585, 7
    %v587 = vsub.s32 0, %v586
    %v588 = vrot.slane %v583, %v587
    %v589 = vsel %vm551, %v588, 0.0
    %v590 = vadd.f32 %v589, 0.0
    %vm591 = vcmp.eq.s32.totalorder %v550, 1
    %v592 = vsel %vm591, %v518, 0.0
    %v593 = vsel %vm143, %v592, 0.0
    %594 = vadd.xlane.f32.xlu0 %v593
    %v595 = vpop.xlane.xlu0 %594
    %v596 = vsel %vm591, %v538, 0.0
    %v597 = vsel %vm143, %v596, 0.0
    %598 = vadd.xlane.f32.xlu0 %v597
    %v599 = vpop.xlane.xlu0 %598
    %v600 = vmul.f32 %v595, 0.001953125
    %v601 = vmul.f32 %v599, 0.001953125
    %v602 = vmul.f32 %v600, %v600
    %v603 = vsub.f32 %v601, %v602
    %v604 = vadd.f32 %v603, 1e-05
    %v605 = vrsqrt.pop %v604
    %v606 = vmul.f32 %v502, %v605
    %v607 = vmul.f32 %v600, %v606
    %v608 = vsub.f32 %v503, %v607
    %610 = vset.pattern.permute.xlu0 1
    %611 = vperm.xlu0 %610, %v606
    %v612 = vpop.permute.xlu0 %611
    %v614 = vlaneseq
    %v615 = vshrl.u32 %v614, 7
    %v616 = vsub.s32 0, %v615
    %v617 = vrot.slane %v612, %v616
    %v618 = vsel %vm591, %v617, 0.0
    %v619 = vadd.f32 %v579, %v618
    %621 = vset.pattern.permute.xlu0 1
    %622 = vperm.xlu0 %621, %v608
    %v623 = vpop.permute.xlu0 %622
    %v625 = vlaneseq
    %v626 = vshrl.u32 %v625, 7
    %v627 = vsub.s32 0, %v626
    %v628 = vrot.slane %v623, %v627
    %v629 = vsel %vm591, %v628, 0.0
    %v630 = vadd.f32 %v590, %v629
    %vm631 = vcmp.eq.s32.totalorder %v550, 2
    %v632 = vsel %vm631, %v518, 0.0
    %v633 = vsel %vm143, %v632, 0.0
    %634 = vadd.xlane.f32.xlu0 %v633
    %v635 = vpop.xlane.xlu0 %634
    %v636 = vsel %vm631, %v538, 0.0
    %v637 = vsel %vm143, %v636, 0.0
    %638 = vadd.xlane.f32.xlu0 %v637
    %v639 = vpop.xlane.xlu0 %638
    %v640 = vmul.f32 %v635, 0.001953125
    %v641 = vmul.f32 %v639, 0.001953125
    %v642 = vmul.f32 %v640, %v640
    %v643 = vsub.f32 %v641, %v642
    %v644 = vadd.f32 %v643, 1e-05
    %v645 = vrsqrt.pop %v644
    %v646 = vmul.f32 %v502, %v645
    %v647 = vmul.f32 %v640, %v646
    %v648 = vsub.f32 %v503, %v647
    %650 = vset.pattern.permute.xlu0 2
    %651 = vperm.xlu0 %650, %v646
    %v652 = vpop.permute.xlu0 %651
    %v654 = vlaneseq
    %v655 = vshrl.u32 %v654, 7
    %v656 = vsub.s32 0, %v655
    %v657 = vrot.slane %v652, %v656
    %v658 = vsel %vm631, %v657, 0.0
    %v659 = vadd.f32 %v619, %v658
    %661 = vset.pattern.permute.xlu0 2
    %662 = vperm.xlu0 %661, %v648
    %v663 = vpop.permute.xlu0 %662
    %v665 = vlaneseq
    %v666 = vshrl.u32 %v665, 7
    %v667 = vsub.s32 0, %v666
    %v668 = vrot.slane %v663, %v667
    %v669 = vsel %vm631, %v668, 0.0
    %v670 = vadd.f32 %v630, %v669
    %vm671 = vcmp.eq.s32.totalorder %v550, 3
    %v672 = vsel %vm671, %v518, 0.0
    %v673 = vsel %vm143, %v672, 0.0
    %674 = vadd.xlane.f32.xlu0 %v673
    %v675 = vpop.xlane.xlu0 %674
    %v676 = vsel %vm671, %v538, 0.0
    %v677 = vsel %vm143, %v676, 0.0
    %678 = vadd.xlane.f32.xlu0 %v677
    %v679 = vpop.xlane.xlu0 %678
    %v680 = vmul.f32 %v675, 0.001953125
    %v681 = vmul.f32 %v679, 0.001953125
    %v682 = vmul.f32 %v680, %v680
    %v683 = vsub.f32 %v681, %v682
    %v684 = vadd.f32 %v683, 1e-05
    %v685 = vrsqrt.pop %v684
    %v686 = vmul.f32 %v502, %v685
    %v687 = vmul.f32 %v680, %v686
    %v688 = vsub.f32 %v503, %v687
    %690 = vset.pattern.permute.xlu0 3
    %691 = vperm.xlu0 %690, %v686
    %v692 = vpop.permute.xlu0 %691
    %v694 = vlaneseq
    %v695 = vshrl.u32 %v694, 7
    %v696 = vsub.s32 0, %v695
    %v697 = vrot.slane %v692, %v696
    %v698 = vsel %vm671, %v697, 0.0
    %v699 = vadd.f32 %v659, %v698
    %701 = vset.pattern.permute.xlu0 3
    %702 = vperm.xlu0 %701, %v688
    %v703 = vpop.permute.xlu0 %702
    %v705 = vlaneseq
    %v706 = vshrl.u32 %v705, 7
    %v707 = vsub.s32 0, %v706
    %v708 = vrot.slane %v703, %v707
    %v709 = vsel %vm671, %v708, 0.0
    %v710 = vadd.f32 %v670, %v709
    %v711 = vsel %vm128, 1, 0
    %vm712 = vcmp.eq.s32.totalorder %v711, 1
    %vm713 = vmand %vm492, %vm712
    %vm714 = vmand %vm493, %vm712
    %vm715 = vmand %vm494, %vm712
    %vm716 = vmand %vm495, %vm712
    %vm717 = vmand %vm496, %vm712
    %v718 = vmul.f32 %v482, %v699
    %v719 = vmul.f32 %v483, %v699
    %v720 = vmul.f32 %v484, %v699
    %v721 = vmul.f32 %v485, %v699
    %v722 = vmul.f32 %v486, %v699
    %v723 = vadd.f32 %v718, %v710
    %v724 = vadd.f32 %v719, %v710
    %v725 = vadd.f32 %v720, %v710
    %v726 = vadd.f32 %v721, %v710
    %v727 = vadd.f32 %v722, %v710
    %v728 = vmax.f32 %v723, 0.0
    %v729 = vmax.f32 %v724, 0.0
    %v730 = vmax.f32 %v725, 0.0
    %v731 = vmax.f32 %v726, 0.0
    %v732 = vmax.f32 %v727, 0.0
    %v733 = vsel %vm713, %v728, 0.0
    %v734 = vsel %vm714, %v729, 0.0
    %v735 = vsel %vm715, %v730, 0.0
    %v736 = vsel %vm716, %v731, 0.0
    %v737 = vsel %vm717, %v732, 0.0
    %738 = vst.msk [vmem:[#allocation2 + $0x1] sm:$0xff] %vm143, %v733
    %739 = vst.msk [vmem:[#allocation2 + $0x9] sm:$0xff] %vm143, %v734
    %740 = vst.msk [vmem:[#allocation2 + $0x11] sm:$0xff] %vm143, %v735
    %741 = vst.msk [vmem:[#allocation2 + $0x19] sm:$0xff] %vm143, %v736
    %vm742 = vcmask 583680
    %743 = vst.msk [vmem:[#allocation2 + $0x21] sm:$0x7] %vm742, %v737
    %744 = vst.msk [vmem:[#allocation2] sm:$0x1] %vm149, 0.0
    %v745 = vld [vmem:[#allocation2] sm:$0xff]
    %v746 = vld [vmem:[#allocation2 + $0x8] sm:$0xff]
    %v747 = vld [vmem:[#allocation2 + $0x10] sm:$0xff]
    %v748 = vld [vmem:[#allocation2 + $0x18] sm:$0xff]
    %v749 = vld [vmem:[#allocation2 + $0x20] sm:$0xf]
    %v750 = vpack.c.bf16 %v746, %v745
    %v751 = vpack.c.bf16 %v748, %v747
    %v752 = vpack.c.bf16 %v749, %v749
    %v753 = vld [vmem:[%s4] sm:$0xf]
    %v754 = vld [vmem:[%s4 + $0x4] sm:$0xf]
    %v755 = vld [vmem:[%s4 + $0x8] sm:$0xf]
    %v756 = vld [vmem:[%s4 + $0xc] sm:$0xf]
    %v757 = vld [vmem:[%s4 + $0x10] sm:$0xf]
    %v758 = vld [vmem:[%s4 + $0x14] sm:$0xf]
    %v759 = vld [vmem:[%s4 + $0x18] sm:$0xf]
    %v760 = vld [vmem:[%s4 + $0x1c] sm:$0xf]
    %v761 = vld [vmem:[%s4 + $0x20] sm:$0xf]
    %v762 = vpack.c.bf16 %v734, %v733
    %v763 = vpack.c.bf16 %v736, %v735
    %v764 = vpack.c.bf16 %v737, %v737
    %s765 = scalar_lea.vmem %s4, 36
    %v766 = vld [vmem:[%s765] sm:$0xf]
    %v767 = vld [vmem:[%s765 + $0x4] sm:$0xf]
    %v768 = vld [vmem:[%s765 + $0x8] sm:$0xf]
    %v769 = vld [vmem:[%s765 + $0xc] sm:$0xf]
    %v770 = vld [vmem:[%s765 + $0x10] sm:$0xf]
    %v771 = vld [vmem:[%s765 + $0x14] sm:$0xf]
    %v772 = vld [vmem:[%s765 + $0x18] sm:$0xf]
    %v773 = vld [vmem:[%s765 + $0x1c] sm:$0xf]
    %v774 = vld [vmem:[%s765 + $0x20] sm:$0xf]
    %v784 = vunpack.c.l.b16 %v766
    %v785 = vunpack.c.l.b16 %v767
    %v786 = vunpack.c.l.b16 %v768
    %v787 = vunpack.c.l.b16 %v769
    %v788 = vunpack.c.l.b16 %v770
    %v789 = vunpack.c.l.b16 %v771
    %v790 = vunpack.c.l.b16 %v772
    %v791 = vunpack.c.l.b16 %v773
    %v792 = vunpack.c.l.b16 %v774
    %v793 = vpack.c.b16 %v785, %v784
    %v794 = vpack.c.b16 %v787, %v786
    %v795 = vpack.c.b16 %v789, %v788
    %v796 = vpack.c.b16 %v791, %v790
    %v797 = vpack.c.b16 %v792, %v792
    %v803 = vsel %vm143, %v762, 0
    %v806 = vsel %vm143, %v763, 0
    %v809 = vsel %vm143, %v764, 0
    %v812 = vsel %vm205, %v797, 0
    %814 = vmatprep.subr.bf16.mxu0 0
    %815 = vmatpush1.bf16.msra.mxu0 0
    %816 = vmatprep.subr.bf16.mxu0 0
    %817 = vmatpush1.bf16.msra.mxu0 0
    %818 = vmatprep.subr.bf16.mxu0 0
    %819 = vmatpush1.bf16.msra.mxu0 0
    %820 = vmatprep.subr.bf16.mxu0 0
    %821 = vmatpush1.bf16.msra.mxu0 %v812
    %822 = vmatprep.subr.bf16.mxu0 0
    %823 = vmatpush1.bf16.msra.mxu0 %v796
    %824 = vmatprep.subr.bf16.mxu0 0
    %825 = vmatpush1.bf16.msra.mxu0 %v795
    %826 = vmatprep.subr.bf16.mxu0 0
    %827 = vmatpush1.bf16.msra.mxu0 %v794
    %828 = vmatprep.subr.bf16.mxu0 0
    %829 = vmatpush1.bf16.msra.mxu0 %v793
    %830 = vmatprep.subr.bf16.mxu0 0
    %831 = vmatpush2.bf16.msra.mxu0 0
    %832 = vmatprep.subr.bf16.mxu0 0
    %833 = vmatpush2.bf16.msra.mxu0 0
    %834 = vmatprep.subr.bf16.mxu0 0
    %835 = vmatpush2.bf16.msra.mxu0 0
    %836 = vmatprep.subr.bf16.mxu0 0
    %837 = vmatpush2.bf16.msra.mxu0 0
    %838 = vmatprep.subr.bf16.mxu0 0
    %839 = vmatpush2.bf16.msra.mxu0 0
    %840 = vmatprep.subr.bf16.mxu0 0
    %841 = vmatpush2.bf16.msra.mxu0 0
    %842 = vmatprep.subr.bf16.mxu0 0
    %843 = vmatpush2.bf16.msra.mxu0 0
    %844 = vmatprep.subr.bf16.mxu0 0
    %845 = vmatpush2.bf16.msra.mxu0 0
    %846 = vmatprep.mubr.bf16.mxu0 0
    %847 = vmatmul.mubr.bf16.gmra.mxu0 %v803
    %v848 = vpop.f32.mrf.mxu0
    %v849 = vadd.f32 0.0, %v848
    %v850 = vpop.f32.mrf.mxu0
    %v851 = vpop.f32.mrf.mxu0
    %v852 = vadd.f32 0.0, %v851
    %v853 = vpop.f32.mrf.mxu0
    %854 = vmatprep.mubr.bf16.mxu0 0
    %855 = vmatmul.mubr.bf16.gmra.mxu0 %v806
    %v856 = vpop.f32.mrf.mxu0
    %v857 = vadd.f32 0.0, %v856
    %v858 = vpop.f32.mrf.mxu0
    %v859 = vpop.f32.mrf.mxu0
    %v860 = vadd.f32 0.0, %v859
    %v861 = vpop.f32.mrf.mxu0
    %862 = vmatprep.mubr.bf16.mxu0 0
    %863 = vmatmul.mubr.bf16.gmra.mxu0 %v809
    %v864 = vpop.f32.mrf.mxu0
    %v865 = vadd.f32 0.0, %v864
    %v866 = vpop.f32.mrf.mxu0
    %v867 = vpop.f32.mrf.mxu0
    %v868 = vpop.f32.mrf.mxu0
    %869 = vdwg.mxu0
    %v879 = vunpack.c.l.b16 %v753
    %v880 = vunpack.c.l.b16 %v754
    %v881 = vunpack.c.l.b16 %v755
    %v882 = vunpack.c.l.b16 %v756
    %v883 = vunpack.c.l.b16 %v757
    %v884 = vunpack.c.l.b16 %v758
    %v885 = vunpack.c.l.b16 %v759
    %v886 = vunpack.c.l.b16 %v760
    %v887 = vunpack.c.l.b16 %v761
    %v888 = vpack.c.b16 %v880, %v879
    %v889 = vpack.c.b16 %v882, %v881
    %v890 = vpack.c.b16 %v884, %v883
    %v891 = vpack.c.b16 %v886, %v885
    %v892 = vpack.c.b16 %v887, %v887
    %v898 = vsel %vm143, %v750, 0
    %v901 = vsel %vm143, %v751, 0
    %v904 = vsel %vm143, %v752, 0
    %v907 = vsel %vm205, %v892, 0
    %909 = vmatprep.subr.bf16.mxu0 0
    %910 = vmatpush1.bf16.msra.mxu0 0
    %911 = vmatprep.subr.bf16.mxu0 0
    %912 = vmatpush1.bf16.msra.mxu0 0
    %913 = vmatprep.subr.bf16.mxu0 0
    %914 = vmatpush1.bf16.msra.mxu0 0
    %915 = vmatprep.subr.bf16.mxu0 0
    %916 = vmatpush1.bf16.msra.mxu0 %v907
    %917 = vmatprep.subr.bf16.mxu0 0
    %918 = vmatpush1.bf16.msra.mxu0 %v891
    %919 = vmatprep.subr.bf16.mxu0 0
    %920 = vmatpush1.bf16.msra.mxu0 %v890
    %921 = vmatprep.subr.bf16.mxu0 0
    %922 = vmatpush1.bf16.msra.mxu0 %v889
    %923 = vmatprep.subr.bf16.mxu0 0
    %924 = vmatpush1.bf16.msra.mxu0 %v888
    %925 = vmatprep.subr.bf16.mxu0 0
    %926 = vmatpush2.bf16.msra.mxu0 0
    %927 = vmatprep.subr.bf16.mxu0 0
    %928 = vmatpush2.bf16.msra.mxu0 0
    %929 = vmatprep.subr.bf16.mxu0 0
    %930 = vmatpush2.bf16.msra.mxu0 0
    %931 = vmatprep.subr.bf16.mxu0 0
    %932 = vmatpush2.bf16.msra.mxu0 0
    %933 = vmatprep.subr.bf16.mxu0 0
    %934 = vmatpush2.bf16.msra.mxu0 0
    %935 = vmatprep.subr.bf16.mxu0 0
    %936 = vmatpush2.bf16.msra.mxu0 0
    %937 = vmatprep.subr.bf16.mxu0 0
    %938 = vmatpush2.bf16.msra.mxu0 0
    %939 = vmatprep.subr.bf16.mxu0 0
    %940 = vmatpush2.bf16.msra.mxu0 0
    %941 = vmatprep.mubr.bf16.mxu0 0
    %942 = vmatmul.mubr.bf16.gmra.mxu0 %v898
    %v943 = vpop.f32.mrf.mxu0
    %v944 = vadd.f32 %v849, %v943
    %v945 = vpop.f32.mrf.mxu0
    %v946 = vpop.f32.mrf.mxu0
    %v947 = vadd.f32 %v852, %v946
    %v948 = vpop.f32.mrf.mxu0
    %949 = vmatprep.mubr.bf16.mxu0 0
    %950 = vmatmul.mubr.bf16.gmra.mxu0 %v901
    %v951 = vpop.f32.mrf.mxu0
    %v952 = vadd.f32 %v857, %v951
    %v953 = vpop.f32.mrf.mxu0
    %v954 = vpop.f32.mrf.mxu0
    %v955 = vadd.f32 %v860, %v954
    %v956 = vpop.f32.mrf.mxu0
    %957 = vmatprep.mubr.bf16.mxu0 0
    %958 = vmatmul.mubr.bf16.gmra.mxu0 %v904
    %v959 = vpop.f32.mrf.mxu0
    %v960 = vadd.f32 %v865, %v959
    %v961 = vpop.f32.mrf.mxu0
    %v962 = vpop.f32.mrf.mxu0
    %v963 = vpop.f32.mrf.mxu0
    %964 = vdwg.mxu0
    %965 = vst.msk [vmem:[%s360 - $0x1] sm:$0xfe] %vm141, %v733
    %966 = vst.msk [vmem:[%s360 + $0x7] sm:$0xff] %vm143, %v734
    %967 = vst.msk [vmem:[%s360 + $0xf] sm:$0xff] %vm143, %v735
    %968 = vst.msk [vmem:[%s360 + $0x17] sm:$0xff] %vm143, %v736
    %969 = vst.msk [vmem:[%s360 + $0x1f] sm:$0xf] %vm147, %v737
    %970 = vst.msk [vmem:[%s360 + $0x23] sm:$0x1] %vm149, 0.0
    %v971 = vld [vmem:[%s360] sm:$0xff]
    %v972 = vld [vmem:[%s360 + $0x8] sm:$0xff]
    %v973 = vld [vmem:[%s360 + $0x10] sm:$0xff]
    %v974 = vld [vmem:[%s360 + $0x18] sm:$0xff]
    %v975 = vld [vmem:[%s360 + $0x20] sm:$0xf]
    %v976 = vpack.c.bf16 %v972, %v971
    %v977 = vpack.c.bf16 %v974, %v973
    %v978 = vpack.c.bf16 %v975, %v975
    %s979 = scalar_lea.vmem %s4, 72
    %v980 = vld [vmem:[%s979] sm:$0xf]
    %v981 = vld [vmem:[%s979 + $0x4] sm:$0xf]
    %v982 = vld [vmem:[%s979 + $0x8] sm:$0xf]
    %v983 = vld [vmem:[%s979 + $0xc] sm:$0xf]
    %v984 = vld [vmem:[%s979 + $0x10] sm:$0xf]
    %v985 = vld [vmem:[%s979 + $0x14] sm:$0xf]
    %v986 = vld [vmem:[%s979 + $0x18] sm:$0xf]
    %v987 = vld [vmem:[%s979 + $0x1c] sm:$0xf]
    %v988 = vld [vmem:[%s979 + $0x20] sm:$0xf]
    %v998 = vunpack.c.l.b16 %v980
    %v999 = vunpack.c.l.b16 %v981
    %v1000 = vunpack.c.l.b16 %v982
    %v1001 = vunpack.c.l.b16 %v983
    %v1002 = vunpack.c.l.b16 %v984
    %v1003 = vunpack.c.l.b16 %v985
    %v1004 = vunpack.c.l.b16 %v986
    %v1005 = vunpack.c.l.b16 %v987
    %v1006 = vunpack.c.l.b16 %v988
    %v1007 = vpack.c.b16 %v999, %v998
    %v1008 = vpack.c.b16 %v1001, %v1000
    %v1009 = vpack.c.b16 %v1003, %v1002
    %v1010 = vpack.c.b16 %v1005, %v1004
    %v1011 = vpack.c.b16 %v1006, %v1006
    %v1017 = vsel %vm143, %v976, 0
    %v1020 = vsel %vm143, %v977, 0
    %v1023 = vsel %vm143, %v978, 0
    %v1026 = vsel %vm205, %v1011, 0
    %1028 = vmatprep.subr.bf16.mxu0 0
    %1029 = vmatpush1.bf16.msra.mxu0 0
    %1030 = vmatprep.subr.bf16.mxu0 0
    %1031 = vmatpush1.bf16.msra.mxu0 0
    %1032 = vmatprep.subr.bf16.mxu0 0
    %1033 = vmatpush1.bf16.msra.mxu0 0
    %1034 = vmatprep.subr.bf16.mxu0 0
    %1035 = vmatpush1.bf16.msra.mxu0 %v1026
    %1036 = vmatprep.subr.bf16.mxu0 0
    %1037 = vmatpush1.bf16.msra.mxu0 %v1010
    %1038 = vmatprep.subr.bf16.mxu0 0
    %1039 = vmatpush1.bf16.msra.mxu0 %v1009
    %1040 = vmatprep.subr.bf16.mxu0 0
    %1041 = vmatpush1.bf16.msra.mxu0 %v1008
    %1042 = vmatprep.subr.bf16.mxu0 0
    %1043 = vmatpush1.bf16.msra.mxu0 %v1007
    %1044 = vmatprep.subr.bf16.mxu0 0
    %1045 = vmatpush2.bf16.msra.mxu0 0
    %1046 = vmatprep.subr.bf16.mxu0 0
    %1047 = vmatpush2.bf16.msra.mxu0 0
    %1048 = vmatprep.subr.bf16.mxu0 0
    %1049 = vmatpush2.bf16.msra.mxu0 0
    %1050 = vmatprep.subr.bf16.mxu0 0
    %1051 = vmatpush2.bf16.msra.mxu0 0
    %1052 = vmatprep.subr.bf16.mxu0 0
    %1053 = vmatpush2.bf16.msra.mxu0 0
    %1054 = vmatprep.subr.bf16.mxu0 0
    %1055 = vmatpush2.bf16.msra.mxu0 0
    %1056 = vmatprep.subr.bf16.mxu0 0
    %1057 = vmatpush2.bf16.msra.mxu0 0
    %1058 = vmatprep.subr.bf16.mxu0 0
    %1059 = vmatpush2.bf16.msra.mxu0 0
    %1060 = vmatprep.mubr.bf16.mxu0 0
    %1061 = vmatmul.mubr.bf16.gmra.mxu0 %v1017
    %v1062 = vpop.f32.mrf.mxu0
    %v1063 = vadd.f32 0.0, %v1062
    %v1064 = vpop.f32.mrf.mxu0
    %v1065 = vpop.f32.mrf.mxu0
    %v1066 = vadd.f32 0.0, %v1065
    %v1067 = vpop.f32.mrf.mxu0
    %1068 = vmatprep.mubr.bf16.mxu0 0
    %1069 = vmatmul.mubr.bf16.gmra.mxu0 %v1020
    %v1070 = vpop.f32.mrf.mxu0
    %v1071 = vadd.f32 0.0, %v1070
    %v1072 = vpop.f32.mrf.mxu0
    %v1073 = vpop.f32.mrf.mxu0
    %v1074 = vadd.f32 0.0, %v1073
    %v1075 = vpop.f32.mrf.mxu0
    %1076 = vmatprep.mubr.bf16.mxu0 0
    %1077 = vmatmul.mubr.bf16.gmra.mxu0 %v1023
    %v1078 = vpop.f32.mrf.mxu0
    %v1079 = vadd.f32 0.0, %v1078
    %v1080 = vpop.f32.mrf.mxu0
    %v1081 = vpop.f32.mrf.mxu0
    %v1082 = vpop.f32.mrf.mxu0
    %1083 = vdwg.mxu0
    %v1084 = vadd.f32 %v944, %v1063
    %v1085 = vadd.f32 %v947, %v1066
    %v1086 = vadd.f32 %v952, %v1071
    %v1087 = vadd.f32 %v955, %v1074
    %v1088 = vadd.f32 %v960, %v1079
    %v1089 = vsel %vm492, %v1084, 0.0
    %v1090 = vsel %vm493, %v1085, 0.0
    %v1091 = vsel %vm494, %v1086, 0.0
    %v1092 = vsel %vm495, %v1087, 0.0
    %v1093 = vsel %vm496, %v1088, 0.0
    %v1094 = vld [vmem:[%s5] sm:$0x1]
    %v1095 = vld [vmem:[%s6] sm:$0x1]
    %vm1096 = vcmask 523264
    %v1097 = vsel %vm1096, %v1089, 0.0
    %v1098 = vsel %vm1096, %v1090, 0.0
    %v1099 = vadd.f32 %v1097, %v1098
    %v1100 = vsel %vm1096, %v1091, 0.0
    %v1101 = vadd.f32 %v1099, %v1100
    %v1102 = vsel %vm1096, %v1092, 0.0
    %v1103 = vadd.f32 %v1101, %v1102
    %vm1104 = vcmask 519168
    %v1105 = vsel %vm1104, %v1093, 0.0
    %v1106 = vadd.f32 %v1103, %v1105
    %v1107 = vrot.slane %v1106, 4
    %v1108 = vadd.f32 %v1106, %v1107
    %v1109 = vrot.slane %v1108, 2
    %v1110 = vadd.f32 %v1108, %v1109
    %v1111 = vrot.slane %v1110, 1
    %v1112 = vadd.f32 %v1110, %v1111
    %v1113 = vmul.f32 %v1089, %v1089
    %v1114 = vmul.f32 %v1090, %v1090
    %v1115 = vmul.f32 %v1091, %v1091
    %v1116 = vmul.f32 %v1092, %v1092
    %v1117 = vmul.f32 %v1093, %v1093
    %v1118 = vsel %vm1096, %v1113, 0.0
    %v1119 = vsel %vm1096, %v1114, 0.0
    %v1120 = vadd.f32 %v1118, %v1119
    %v1121 = vsel %vm1096, %v1115, 0.0
    %v1122 = vadd.f32 %v1120, %v1121
    %v1123 = vsel %vm1096, %v1116, 0.0
    %v1124 = vadd.f32 %v1122, %v1123
    %v1125 = vsel %vm1104, %v1117, 0.0
    %v1126 = vadd.f32 %v1124, %v1125
    %v1127 = vrot.slane %v1126, 4
    %v1128 = vadd.f32 %v1126, %v1127
    %v1129 = vrot.slane %v1128, 2
    %v1130 = vadd.f32 %v1128, %v1129
    %v1131 = vrot.slane %v1130, 1
    %v1132 = vadd.f32 %v1130, %v1131
    %v1133 = vsel %vm551, %v1112, 0.0
    %v1134 = vsel %vm1096, %v1133, 0.0
    %1135 = vadd.xlane.f32.xlu0 %v1134
    %v1136 = vpop.xlane.xlu0 %1135
    %v1137 = vsel %vm551, %v1132, 0.0
    %v1138 = vsel %vm1096, %v1137, 0.0
    %1139 = vadd.xlane.f32.xlu0 %v1138
    %v1140 = vpop.xlane.xlu0 %1139
    %v1141 = vmul.f32 %v1136, 0.001953125
    %v1142 = vmul.f32 %v1140, 0.001953125
    %v1143 = vmul.f32 %v1141, %v1141
    %v1144 = vsub.f32 %v1142, %v1143
    %v1145 = vadd.f32 %v1144, 1e-05
    %v1146 = vrsqrt.pop %v1145
    %v1147 = vmul.f32 %v1094, %v1146
    %v1148 = vmul.f32 %v1141, %v1147
    %v1149 = vsub.f32 %v1095, %v1148
    %1151 = vset.pattern.permute.xlu0 0
    %1152 = vperm.xlu0 %1151, %v1147
    %v1153 = vpop.permute.xlu0 %1152
    %v1155 = vlaneseq
    %v1156 = vshrl.u32 %v1155, 7
    %v1157 = vsub.s32 0, %v1156
    %v1158 = vrot.slane %v1153, %v1157
    %v1159 = vsel %vm551, %v1158, 0.0
    %v1160 = vadd.f32 %v1159, 0.0
    %1162 = vset.pattern.permute.xlu0 0
    %1163 = vperm.xlu0 %1162, %v1149
    %v1164 = vpop.permute.xlu0 %1163
    %v1166 = vlaneseq
    %v1167 = vshrl.u32 %v1166, 7
    %v1168 = vsub.s32 0, %v1167
    %v1169 = vrot.slane %v1164, %v1168
    %v1170 = vsel %vm551, %v1169, 0.0
    %v1171 = vadd.f32 %v1170, 0.0
    %v1172 = vsel %vm591, %v1112, 0.0
    %v1173 = vsel %vm1096, %v1172, 0.0
    %1174 = vadd.xlane.f32.xlu0 %v1173
    %v1175 = vpop.xlane.xlu0 %1174
    %v1176 = vsel %vm591, %v1132, 0.0
    %v1177 = vsel %vm1096, %v1176, 0.0
    %1178 = vadd.xlane.f32.xlu0 %v1177
    %v1179 = vpop.xlane.xlu0 %1178
    %v1180 = vmul.f32 %v1175, 0.001953125
    %v1181 = vmul.f32 %v1179, 0.001953125
    %v1182 = vmul.f32 %v1180, %v1180
    %v1183 = vsub.f32 %v1181, %v1182
    %v1184 = vadd.f32 %v1183, 1e-05
    %v1185 = vrsqrt.pop %v1184
    %v1186 = vmul.f32 %v1094, %v1185
    %v1187 = vmul.f32 %v1180, %v1186
    %v1188 = vsub.f32 %v1095, %v1187
    %1190 = vset.pattern.permute.xlu0 1
    %1191 = vperm.xlu0 %1190, %v1186
    %v1192 = vpop.permute.xlu0 %1191
    %v1194 = vlaneseq
    %v1195 = vshrl.u32 %v1194, 7
    %v1196 = vsub.s32 0, %v1195
    %v1197 = vrot.slane %v1192, %v1196
    %v1198 = vsel %vm591, %v1197, 0.0
    %v1199 = vadd.f32 %v1160, %v1198
    %1201 = vset.pattern.permute.xlu0 1
    %1202 = vperm.xlu0 %1201, %v1188
    %v1203 = vpop.permute.xlu0 %1202
    %v1205 = vlaneseq
    %v1206 = vshrl.u32 %v1205, 7
    %v1207 = vsub.s32 0, %v1206
    %v1208 = vrot.slane %v1203, %v1207
    %v1209 = vsel %vm591, %v1208, 0.0
    %v1210 = vadd.f32 %v1171, %v1209
    %v1211 = vsel %vm631, %v1112, 0.0
    %v1212 = vsel %vm1096, %v1211, 0.0
    %1213 = vadd.xlane.f32.xlu0 %v1212
    %v1214 = vpop.xlane.xlu0 %1213
    %v1215 = vsel %vm631, %v1132, 0.0
    %v1216 = vsel %vm1096, %v1215, 0.0
    %1217 = vadd.xlane.f32.xlu0 %v1216
    %v1218 = vpop.xlane.xlu0 %1217
    %v1219 = vmul.f32 %v1214, 0.001953125
    %v1220 = vmul.f32 %v1218, 0.001953125
    %v1221 = vmul.f32 %v1219, %v1219
    %v1222 = vsub.f32 %v1220, %v1221
    %v1223 = vadd.f32 %v1222, 1e-05
    %v1224 = vrsqrt.pop %v1223
    %v1225 = vmul.f32 %v1094, %v1224
    %v1226 = vmul.f32 %v1219, %v1225
    %v1227 = vsub.f32 %v1095, %v1226
    %1229 = vset.pattern.permute.xlu0 2
    %1230 = vperm.xlu0 %1229, %v1225
    %v1231 = vpop.permute.xlu0 %1230
    %v1233 = vlaneseq
    %v1234 = vshrl.u32 %v1233, 7
    %v1235 = vsub.s32 0, %v1234
    %v1236 = vrot.slane %v1231, %v1235
    %v1237 = vsel %vm631, %v1236, 0.0
    %v1238 = vadd.f32 %v1199, %v1237
    %1240 = vset.pattern.permute.xlu0 2
    %1241 = vperm.xlu0 %1240, %v1227
    %v1242 = vpop.permute.xlu0 %1241
    %v1244 = vlaneseq
    %v1245 = vshrl.u32 %v1244, 7
    %v1246 = vsub.s32 0, %v1245
    %v1247 = vrot.slane %v1242, %v1246
    %v1248 = vsel %vm631, %v1247, 0.0
    %v1249 = vadd.f32 %v1210, %v1248
    %v1250 = vsel %vm671, %v1112, 0.0
    %v1251 = vsel %vm1096, %v1250, 0.0
    %1252 = vadd.xlane.f32.xlu0 %v1251
    %v1253 = vpop.xlane.xlu0 %1252
    %v1254 = vsel %vm671, %v1132, 0.0
    %v1255 = vsel %vm1096, %v1254, 0.0
    %1256 = vadd.xlane.f32.xlu0 %v1255
    %v1257 = vpop.xlane.xlu0 %1256
    %v1258 = vmul.f32 %v1253, 0.001953125
    %v1259 = vmul.f32 %v1257, 0.001953125
    %v1260 = vmul.f32 %v1258, %v1258
    %v1261 = vsub.f32 %v1259, %v1260
    %v1262 = vadd.f32 %v1261, 1e-05
    %v1263 = vrsqrt.pop %v1262
    %v1264 = vmul.f32 %v1094, %v1263
    %v1265 = vmul.f32 %v1258, %v1264
    %v1266 = vsub.f32 %v1095, %v1265
    %1268 = vset.pattern.permute.xlu0 3
    %1269 = vperm.xlu0 %1268, %v1264
    %v1270 = vpop.permute.xlu0 %1269
    %v1272 = vlaneseq
    %v1273 = vshrl.u32 %v1272, 7
    %v1274 = vsub.s32 0, %v1273
    %v1275 = vrot.slane %v1270, %v1274
    %v1276 = vsel %vm671, %v1275, 0.0
    %v1277 = vadd.f32 %v1238, %v1276
    %1279 = vset.pattern.permute.xlu0 3
    %1280 = vperm.xlu0 %1279, %v1266
    %v1281 = vpop.permute.xlu0 %1280
    %v1283 = vlaneseq
    %v1284 = vshrl.u32 %v1283, 7
    %v1285 = vsub.s32 0, %v1284
    %v1286 = vrot.slane %v1281, %v1285
    %v1287 = vsel %vm671, %v1286, 0.0
    %v1288 = vadd.f32 %v1249, %v1287
    %v1289 = vmul.f32 %v1084, %v1277
    %v1290 = vmul.f32 %v1085, %v1277
    %v1291 = vmul.f32 %v1086, %v1277
    %v1292 = vmul.f32 %v1087, %v1277
    %v1293 = vmul.f32 %v1088, %v1277
    %v1294 = vadd.f32 %v1289, %v1288
    %v1295 = vadd.f32 %v1290, %v1288
    %v1296 = vadd.f32 %v1291, %v1288
    %v1297 = vadd.f32 %v1292, %v1288
    %v1298 = vadd.f32 %v1293, %v1288
    %vm1304 = vcmask 1046528
    %v1305 = vrot.slane %v28, 1
    %v1306 = vrot.slane %v29, 1
    %v1307 = vsel %vm1304, %v1305, %v1306
    %v1308 = vrot.slane %v30, 1
    %v1309 = vsel %vm1304, %v1306, %v1308
    %v1310 = vrot.slane %v31, 1
    %v1311 = vsel %vm1304, %v1308, %v1310
    %v1312 = vrot.slane %v32, 1
    %v1313 = vsel %vm1304, %v1310, %v1312
    %1314 = vrot.lane.b32.xlu0 %v1307, 124
    %v1315 = vpop.permute.xlu0 %1314
    %1316 = vrot.lane.b32.xlu0 %v1309, 124
    %v1317 = vpop.permute.xlu0 %1316
    %1318 = vrot.lane.b32.xlu0 %v1311, 124
    %v1319 = vpop.permute.xlu0 %1318
    %1320 = vrot.lane.b32.xlu0 %v1313, 124
    %v1321 = vpop.permute.xlu0 %1320
    %1322 = vrot.lane.b32.xlu0 %v1312, 124
    %v1323 = vpop.permute.xlu0 %1322
    %v1329 = vadd.f32 %v1294, %v1315
    %v1330 = vadd.f32 %v1295, %v1317
    %v1331 = vadd.f32 %v1296, %v1319
    %v1332 = vadd.f32 %v1297, %v1321
    %v1333 = vadd.f32 %v1298, %v1323
    %v1334 = vmax.f32 %v1329, 0.0
    %v1335 = vmax.f32 %v1330, 0.0
    %v1336 = vmax.f32 %v1331, 0.0
    %v1337 = vmax.f32 %v1332, 0.0
    %v1338 = vmax.f32 %v1333, 0.0
    %1339 = vst.msk [vmem:[#allocation3] sm:$0xff] %vm1096, %v1334
    %1340 = vst.msk [vmem:[#allocation3 + $0x8] sm:$0xff] %vm1096, %v1335
    %1341 = vst.msk [vmem:[#allocation3 + $0x10] sm:$0xff] %vm1096, %v1336
    %1342 = vst.msk [vmem:[#allocation3 + $0x18] sm:$0xff] %vm1096, %v1337
    %vm1343 = vcmask 518144
    %1344 = vst.msk [vmem:[#allocation3 + $0x20] sm:$0x7] %vm1343, %v1338
    %vm1345 = vcmask 516096
    %1346 = vst.msk [vmem:[#allocation3 + $0x23] sm:$0x1] %vm1345, 0.0
    // Predicated region
    $region30: #{tpu_custom_call.1} parent=1 // pred_check
      _
    $region31: #{tpu_custom_call.1} parent=1 // pred_check_branch
      %1348 = sbr.rel (0) target = $region33
    $region32: #{tpu_custom_call.1} parent=1 // pred_region
      %s1350 = ssub.s32 640, 640
      %1351 = vsyncadd [#allocation4], %s1350
      %s1352 = sshll.u32 [#allocation3], 4
      %s1353 = int_to_ptr.vmem [resolvable:$true] %s1352
      %1358 = dma.vmem_to_hbm [thread:$0]  %s1353, 640, %s7, [#allocation4], 128, 128, 8
    $region33: #{tpu_custom_call.1} parent=1 // pred_fallthru
      _
    // Predicated region
    $region34: #{tpu_custom_call.1} parent=1 // pred_check
      _
    $region35: #{tpu_custom_call.1} parent=1 // pred_check_branch
      %1360 = sbr.rel (0) target = $region37
    $region36: #{tpu_custom_call.1} parent=1 // pred_region
      %1361 = dma.done [#allocation4], 640
    $region37: #{tpu_custom_call.1} parent=1 // pred_fallthru
      _
    %1362 = vsyncpa [#allocation4], 1

</llo_original>
